<compile_context>
chip_gen: v7x
topology: tpu7x:2x2x1
jax: 0.10.0
libtpu: 0.0.40
codegen_flags: <defaults>
</compile_context>

<pallas_src>
import functools

import jax
import jax.numpy as jnp
from jax.experimental import pallas as pl
from jax.experimental.pallas import tpu as pltpu


def _round_up(n, m):
    return ((n + m - 1) // m) * m


def _vae_fwd_kernel(x_ref, eps_ref,
                    w_enc_ref, b_enc_ref,
                    w_ml_ref, b_ml_ref,
                    w_dec1_ref, b_dec1_ref,
                    w_dec2_ref, b_dec2_ref,
                    recon_ref, mulv_ref,
                    hd_ref, *, latent_pad):
    j = pl.program_id(1)   # decoder output-tile index (innermost, "arbitrary")

    # Encoder + reparameterization + first decoder layer run once per batch
    # tile (at j == 0); the resulting hidden activation is kept in VMEM
    # scratch and reused for every decoder output tile.
    @pl.when(j == 0)
    def _encode():
        xb = x_ref[...].astype(jnp.bfloat16)
        h = jnp.dot(xb, w_enc_ref[...], preferred_element_type=jnp.float32)
        h = jnp.maximum(h + b_enc_ref[...], 0.0)                      # ReLU

        # fused [mu | logvar] projection -> lane-dense (TB, 2*Lp) output
        ml = jnp.dot(h.astype(jnp.bfloat16), w_ml_ref[...],
                     preferred_element_type=jnp.float32) + b_ml_ref[...]
        mulv_ref[...] = ml

        mu = ml[:, :latent_pad]
        logvar = ml[:, latent_pad:]
        # z = mu + eps * exp(0.5 * logvar)   (padded lanes: 0 + 0*exp(0) = 0)
        z = mu + eps_ref[...] * jnp.exp(0.5 * logvar)

        hd = jnp.dot(z.astype(jnp.bfloat16), w_dec1_ref[...],
                     preferred_element_type=jnp.float32)
        hd_ref[...] = jnp.maximum(hd + b_dec1_ref[...], 0.0)          # ReLU

    # Decoder output tile: recon[:, j*TD:(j+1)*TD]
    recon = jnp.dot(hd_ref[...].astype(jnp.bfloat16), w_dec2_ref[...],
                    preferred_element_type=jnp.float32) + b_dec2_ref[...]
    recon_ref[...] = recon.astype(recon_ref.dtype)


def vae_forward(x_nchw, eps, params):
    """x_nchw: (B, C, H, W) float32.  Returns [recon, input, mu, logvar]."""
    B, C, H, W = x_nchw.shape
    D = C * H * W
    Hh = params["w_enc"].shape[1]        # logical hidden size
    L = params["w_mu"].shape[1]          # logical latent size
    assert eps.shape == (B, L)

    # ---- lane/sublane-friendly padded sizes & tiles ----
    Dp = _round_up(D, 128)
    Hp = _round_up(Hh, 128)
    Lp = _round_up(L, 128)
    TB = 128 if B >= 128 else _round_up(B, 8)
    Bp = _round_up(B, TB)
    TD = 512 if Dp % 512 == 0 else (256 if Dp % 256 == 0 else 128)

    f32, bf16 = jnp.float32, jnp.bfloat16

    # ---- pad inputs (zero padding is exact: padded lanes contribute 0) ----
    x_flat = x_nchw.reshape(B, D).astype(f32)
    x_p = jnp.zeros((Bp, Dp), f32).at[:B, :D].set(x_flat)
    eps_p = jnp.zeros((Bp, Lp), f32).at[:B, :L].set(eps.astype(f32))

    # ---- pad / fuse weights (bf16 operands, f32 biases & accumulation) ----
    w_enc = jnp.zeros((Dp, Hp), f32).at[:D, :Hh].set(params["w_enc"]).astype(bf16)
    b_enc = jnp.zeros((1, Hp), f32).at[0, :Hh].set(params["b_enc"].reshape(-1))

    w_ml = (jnp.zeros((Hp, 2 * Lp), f32)
            .at[:Hh, :L].set(params["w_mu"])
            .at[:Hh, Lp:Lp + L].set(params["w_lv"])).astype(bf16)
    b_ml = (jnp.zeros((1, 2 * Lp), f32)
            .at[0, :L].set(params["b_mu"].reshape(-1))
            .at[0, Lp:Lp + L].set(params["b_lv"].reshape(-1)))

    w_dec1 = jnp.zeros((Lp, Hp), f32).at[:L, :Hh].set(params["w_dec1"]).astype(bf16)
    b_dec1 = jnp.zeros((1, Hp), f32).at[0, :Hh].set(params["b_dec1"].reshape(-1))

    w_dec2 = jnp.zeros((Hp, Dp), f32).at[:Hh, :D].set(params["w_dec2"]).astype(bf16)
    b_dec2 = jnp.zeros((1, Dp), f32).at[0, :D].set(params["b_dec2"].reshape(-1))

    grid = (Bp // TB, Dp // TD)

    # ---- VMEM budget (portable down to v7x's 64 MiB physical VMEM) ----
    resident = (w_enc.size + w_ml.size + w_dec1.size) * 2 \
        + (b_enc.size + b_ml.size + b_dec1.size) * 4
    per_step = (TB * Dp * 4 + TB * Lp * 4            # x, eps
                + Hp * TD * 2 + TD * 4               # w_dec2 tile, b_dec2 tile
                + TB * TD * 4 + TB * 2 * Lp * 4)     # recon tile, [mu|logvar]
    vmem_bytes = 2 * (resident + 2 * per_step) + TB * Hp * 4 + (2 << 20)
    vmem_bytes = int(min(max(vmem_bytes, 8 << 20), 64 << 20))

    flops = 2 * Bp * (Dp * Hp + Hp * 2 * Lp + Lp * Hp + Hp * Dp)
    bytes_accessed = (x_p.size * 4 + eps_p.size * 4
                      + (w_enc.size + w_ml.size + w_dec1.size + w_dec2.size) * 2
                      + (b_enc.size + b_ml.size + b_dec1.size + b_dec2.size) * 4
                      + Bp * Dp * 4 + Bp * 2 * Lp * 4)
    cost = pl.CostEstimate(flops=flops, transcendentals=Bp * Lp,
                           bytes_accessed=bytes_accessed)

    kernel = functools.partial(_vae_fwd_kernel, latent_pad=Lp)

    recon_p, mulv = pl.pallas_call(
        kernel,
        out_shape=(
            jax.ShapeDtypeStruct((Bp, Dp), jnp.float32),
            jax.ShapeDtypeStruct((Bp, 2 * Lp), jnp.float32),
        ),
        grid_spec=pltpu.PrefetchScalarGridSpec(
            num_scalar_prefetch=0,
            grid=grid,
            in_specs=[
                pl.BlockSpec((TB, Dp), lambda i, j: (i, 0)),        # x (per batch tile)
                pl.BlockSpec((TB, Lp), lambda i, j: (i, 0)),        # eps
                pl.BlockSpec((Dp, Hp), lambda i, j: (0, 0)),        # w_enc (resident)
                pl.BlockSpec((1, Hp), lambda i, j: (0, 0)),         # b_enc (resident)
                pl.BlockSpec((Hp, 2 * Lp), lambda i, j: (0, 0)),    # w_[mu|lv] fused
                pl.BlockSpec((1, 2 * Lp), lambda i, j: (0, 0)),     # b_[mu|lv]
                pl.BlockSpec((Lp, Hp), lambda i, j: (0, 0)),        # w_dec1 (resident)
                pl.BlockSpec((1, Hp), lambda i, j: (0, 0)),         # b_dec1
                pl.BlockSpec((Hp, TD), lambda i, j: (0, j)),        # w_dec2 D-tile
                pl.BlockSpec((1, TD), lambda i, j: (0, j)),         # b_dec2 D-tile
            ],
            out_specs=(
                pl.BlockSpec((TB, TD), lambda i, j: (i, j)),        # recon tile
                pl.BlockSpec((TB, 2 * Lp), lambda i, j: (i, 0)),    # [mu|logvar]
            ),
            scratch_shapes=[pltpu.VMEM((TB, Hp), jnp.float32)],     # decoder hidden
        ),
        compiler_params=pltpu.CompilerParams(
            dimension_semantics=("parallel", "arbitrary"),
            vmem_limit_bytes=vmem_bytes,
        ),
        cost_estimate=cost,
    )(x_p, eps_p, w_enc, b_enc, w_ml, b_ml, w_dec1, b_dec1, w_dec2, b_dec2)

    recon = recon_p[:B, :D].reshape(B, C, H, W)
    mu = mulv[:B, :L]
    logvar = mulv[:B, Lp:Lp + L]
    return [recon, x_nchw, mu, logvar]


def vae_forward_ref(x_nchw, eps, params):
    """Pure-JAX f32 reference of the same forward pass."""
    B = x_nchw.shape[0]
    x = x_nchw.reshape(B, -1)
    h = jax.nn.relu(x @ params["w_enc"] + params["b_enc"].reshape(-1))
    mu = h @ params["w_mu"] + params["b_mu"].reshape(-1)
    logvar = h @ params["w_lv"] + params["b_lv"].reshape(-1)
    z = mu + eps * jnp.exp(0.5 * logvar)
    hd = jax.nn.relu(z @ params["w_dec1"] + params["b_dec1"].reshape(-1))
    recon = hd @ params["w_dec2"] + params["b_dec2"].reshape(-1)
    return recon.reshape(x_nchw.shape), mu, logvar


def init_params(key, D, hidden, latent):
    ks = jax.random.split(key, 5)
    scale = 0.02
    return {
        "w_enc":  scale * jax.random.normal(ks[0], (D, hidden), jnp.float32),
        "b_enc":  jnp.zeros((hidden,), jnp.float32),
        "w_mu":   scale * jax.random.normal(ks[1], (hidden, latent), jnp.float32),
        "b_mu":   jnp.zeros((latent,), jnp.float32),
        "w_lv":   scale * jax.random.normal(ks[2], (hidden, latent), jnp.float32),
        "b_lv":   jnp.zeros((latent,), jnp.float32),
        "w_dec1": scale * jax.random.normal(ks[3], (latent, hidden), jnp.float32),
        "b_dec1": jnp.zeros((hidden,), jnp.float32),
        "w_dec2": scale * jax.random.normal(ks[4], (hidden, D), jnp.float32),
        "b_dec2": jnp.zeros((D,), jnp.float32),
    }


if __name__ == "__main__":
    key = jax.random.PRNGKey(0)
    k_x, k_eps, k_p = jax.random.split(key, 3)

    B, C, H, W = 2, 4, 16, 16
    hidden, latent = 32, 8
    D = C * H * W

    x = jax.random.normal(k_x, (B, C, H, W), jnp.float32)
    eps = jax.random.normal(k_eps, (B, latent), jnp.float32)
    params = init_params(k_p, D, hidden, latent)

    recon, x_out, mu, logvar = vae_forward(x, eps, params)
    jax.block_until_ready((recon, x_out, mu, logvar))

    assert recon.shape == (B, C, H, W)
    assert mu.shape == (B, latent) and logvar.shape == (B, latent)

    # Correctness vs. pure-JAX f32 reference (kernel uses bf16 weights).
    r_ref, mu_r, lv_r = vae_forward_ref(x, eps, params)
    assert bool(jnp.allclose(recon, r_ref, atol=5e-2, rtol=5e-2))
    assert bool(jnp.allclose(mu, mu_r, atol=5e-2, rtol=5e-2))
    assert bool(jnp.allclose(logvar, lv_r, atol=5e-2, rtol=5e-2))

    print("KERNEL_OK")
</pallas_src>

<mosaic_0001>
module attributes {stable_mosaic.version = 11 : i64} {
  func.func @_vae_fwd_kernel(%arg0: i32, %arg1: i32, %arg2: memref<8x1024xf32, #tpu.memory_space<vmem>>, %arg3: memref<8x128xf32, #tpu.memory_space<vmem>>, %arg4: memref<1024x128xbf16, #tpu.memory_space<vmem>>, %arg5: memref<1x128xf32, #tpu.memory_space<vmem>>, %arg6: memref<128x256xbf16, #tpu.memory_space<vmem>>, %arg7: memref<1x256xf32, #tpu.memory_space<vmem>>, %arg8: memref<128x128xbf16, #tpu.memory_space<vmem>>, %arg9: memref<1x128xf32, #tpu.memory_space<vmem>>, %arg10: memref<128x512xbf16, #tpu.memory_space<vmem>>, %arg11: memref<1x512xf32, #tpu.memory_space<vmem>>, %arg12: memref<8x512xf32, #tpu.memory_space<vmem>>, %arg13: memref<8x256xf32, #tpu.memory_space<vmem>>, %arg14: memref<8x128xf32, #tpu.memory_space<vmem>>) attributes {dimension_semantics = [#tpu.dimension_semantics<parallel>, #tpu.dimension_semantics<arbitrary>], iteration_bounds = array<i64: 1, 2>, scalar_prefetch = 0 : i64, scratch_operands = 1 : i64, tpu.core_type = #tpu.core_type<tc>, window_params = [{transform_indices = @transform_0, window_bounds = array<i64: 8, 1024>}, {transform_indices = @transform_1, window_bounds = array<i64: 8, 128>}, {pipeline_mode = #tpu.pipeline_mode<synchronous>, transform_indices = @transform_2, window_bounds = array<i64: 1024, 128>}, {pipeline_mode = #tpu.pipeline_mode<synchronous>, transform_indices = @transform_3, window_bounds = array<i64: 1, 128>}, {pipeline_mode = #tpu.pipeline_mode<synchronous>, transform_indices = @transform_4, window_bounds = array<i64: 128, 256>}, {pipeline_mode = #tpu.pipeline_mode<synchronous>, transform_indices = @transform_5, window_bounds = array<i64: 1, 256>}, {pipeline_mode = #tpu.pipeline_mode<synchronous>, transform_indices = @transform_6, window_bounds = array<i64: 128, 128>}, {pipeline_mode = #tpu.pipeline_mode<synchronous>, transform_indices = @transform_7, window_bounds = array<i64: 1, 128>}, {transform_indices = @transform_8, window_bounds = array<i64: 128, 512>}, {transform_indices = @transform_9, window_bounds = array<i64: 1, 512>}, {transform_indices = @transform_10, window_bounds = array<i64: 8, 512>}, {transform_indices = @transform_11, window_bounds = array<i64: 8, 256>}]} {
    %c0_i32 = arith.constant 0 : i32
    %0 = arith.cmpi eq, %arg1, %c0_i32 : i32
    %1 = arith.extui %0 : i1 to i32
    %c0_i32_0 = arith.constant 0 : i32
    %2 = arith.cmpi ne, %1, %c0_i32_0 : i32
    scf.if %2 {
      %c0_8 = arith.constant 0 : index
      %c0_9 = arith.constant 0 : index
      %11 = vector.load %arg2[%c0_8, %c0_9] : memref<8x1024xf32, #tpu.memory_space<vmem>>, vector<8x1024xf32>
      %12 = arith.truncf %11 : vector<8x1024xf32> to vector<8x1024xbf16>
      %c0_10 = arith.constant 0 : index
      %c0_11 = arith.constant 0 : index
      %13 = vector.load %arg4[%c0_10, %c0_11] : memref<1024x128xbf16, #tpu.memory_space<vmem>>, vector<1024x128xbf16>
      %cst_12 = arith.constant dense<0.000000e+00> : vector<8x128xf32>
      %14 = tpu.matmul %12, %13, %cst_12 {dimension_numbers = #tpu.dot_dimension_numbers<[1], [0], [0], [1], [0, 0, 1, 1], [], []>} : vector<8x1024xbf16>, vector<1024x128xbf16>, vector<8x128xf32> -> vector<8x128xf32>
      %c0_13 = arith.constant 0 : index
      %c0_14 = arith.constant 0 : index
      %15 = vector.load %arg5[%c0_13, %c0_14] : memref<1x128xf32, #tpu.memory_space<vmem>>, vector<1x128xf32>
      %16 = vector.broadcast %15 : vector<1x128xf32> to vector<8x128xf32>
      %17 = arith.addf %14, %16 : vector<8x128xf32>
      %cst_15 = arith.constant 0.000000e+00 : f32
      %18 = vector.broadcast %cst_15 : f32 to vector<8x128xf32>
      %19 = arith.maximumf %17, %18 : vector<8x128xf32>
      %20 = arith.truncf %19 : vector<8x128xf32> to vector<8x128xbf16>
      %c0_16 = arith.constant 0 : index
      %c0_17 = arith.constant 0 : index
      %21 = vector.load %arg6[%c0_16, %c0_17] : memref<128x256xbf16, #tpu.memory_space<vmem>>, vector<128x256xbf16>
      %cst_18 = arith.constant dense<0.000000e+00> : vector<8x256xf32>
      %22 = tpu.matmul %20, %21, %cst_18 {dimension_numbers = #tpu.dot_dimension_numbers<[1], [0], [0], [1], [0, 0, 1, 1], [], []>} : vector<8x128xbf16>, vector<128x256xbf16>, vector<8x256xf32> -> vector<8x256xf32>
      %c0_19 = arith.constant 0 : index
      %c0_20 = arith.constant 0 : index
      %23 = vector.load %arg7[%c0_19, %c0_20] : memref<1x256xf32, #tpu.memory_space<vmem>>, vector<1x256xf32>
      %24 = vector.broadcast %23 : vector<1x256xf32> to vector<8x256xf32>
      %25 = arith.addf %22, %24 : vector<8x256xf32>
      %c0_21 = arith.constant 0 : index
      %c0_22 = arith.constant 0 : index
      %26 = vector.load %arg13[%c0_21, %c0_22] : memref<8x256xf32, #tpu.memory_space<vmem>>, vector<8x256xf32>
      tpu.vector_store %arg13[%c0_21, %c0_22], %25 {strides = array<i32>} : memref<8x256xf32, #tpu.memory_space<vmem>>, vector<8x256xf32>,
      %27 = vector.extract_strided_slice %25 {offsets = [0, 0], sizes = [8, 128], strides = [1, 1]} : vector<8x256xf32> to vector<8x128xf32>
      %28 = vector.extract_strided_slice %25 {offsets = [0, 128], sizes = [8, 128], strides = [1, 1]} : vector<8x256xf32> to vector<8x128xf32>
      %c0_23 = arith.constant 0 : index
      %c0_24 = arith.constant 0 : index
      %29 = vector.load %arg3[%c0_23, %c0_24] : memref<8x128xf32, #tpu.memory_space<vmem>>, vector<8x128xf32>
      %cst_25 = arith.constant 5.000000e-01 : f32
      %30 = vector.broadcast %cst_25 : f32 to vector<8x128xf32>
      %31 = arith.mulf %30, %28 : vector<8x128xf32>
      %32 = math.exp %31 : vector<8x128xf32>
      %33 = arith.mulf %29, %32 : vector<8x128xf32>
      %34 = arith.addf %27, %33 : vector<8x128xf32>
      %35 = arith.truncf %34 : vector<8x128xf32> to vector<8x128xbf16>
      %c0_26 = arith.constant 0 : index
      %c0_27 = arith.constant 0 : index
      %36 = vector.load %arg8[%c0_26, %c0_27] : memref<128x128xbf16, #tpu.memory_space<vmem>>, vector<128x128xbf16>
      %cst_28 = arith.constant dense<0.000000e+00> : vector<8x128xf32>
      %37 = tpu.matmul %35, %36, %cst_28 {dimension_numbers = #tpu.dot_dimension_numbers<[1], [0], [0], [1], [0, 0, 1, 1], [], []>} : vector<8x128xbf16>, vector<128x128xbf16>, vector<8x128xf32> -> vector<8x128xf32>
      %c0_29 = arith.constant 0 : index
      %c0_30 = arith.constant 0 : index
      %38 = vector.load %arg9[%c0_29, %c0_30] : memref<1x128xf32, #tpu.memory_space<vmem>>, vector<1x128xf32>
      %39 = vector.broadcast %38 : vector<1x128xf32> to vector<8x128xf32>
      %40 = arith.addf %37, %39 : vector<8x128xf32>
      %cst_31 = arith.constant 0.000000e+00 : f32
      %41 = vector.broadcast %cst_31 : f32 to vector<8x128xf32>
      %42 = arith.maximumf %40, %41 : vector<8x128xf32>
      %c0_32 = arith.constant 0 : index
      %c0_33 = arith.constant 0 : index
      %43 = vector.load %arg14[%c0_32, %c0_33] : memref<8x128xf32, #tpu.memory_space<vmem>>, vector<8x128xf32>
      tpu.vector_store %arg14[%c0_32, %c0_33], %42 {strides = array<i32>} : memref<8x128xf32, #tpu.memory_space<vmem>>, vector<8x128xf32>,
    } else {
    }
    %c0 = arith.constant 0 : index
    %c0_1 = arith.constant 0 : index
    %3 = vector.load %arg14[%c0, %c0_1] : memref<8x128xf32, #tpu.memory_space<vmem>>, vector<8x128xf32>
    %4 = arith.truncf %3 : vector<8x128xf32> to vector<8x128xbf16>
    %c0_2 = arith.constant 0 : index
    %c0_3 = arith.constant 0 : index
    %5 = vector.load %arg10[%c0_2, %c0_3] : memref<128x512xbf16, #tpu.memory_space<vmem>>, vector<128x512xbf16>
    %cst = arith.constant dense<0.000000e+00> : vector<8x512xf32>
    %6 = tpu.matmul %4, %5, %cst {dimension_numbers = #tpu.dot_dimension_numbers<[1], [0], [0], [1], [0, 0, 1, 1], [], []>} : vector<8x128xbf16>, vector<128x512xbf16>, vector<8x512xf32> -> vector<8x512xf32>
    %c0_4 = arith.constant 0 : index
    %c0_5 = arith.constant 0 : index
    %7 = vector.load %arg11[%c0_4, %c0_5] : memref<1x512xf32, #tpu.memory_space<vmem>>, vector<1x512xf32>
    %8 = vector.broadcast %7 : vector<1x512xf32> to vector<8x512xf32>
    %9 = arith.addf %6, %8 : vector<8x512xf32>
    %c0_6 = arith.constant 0 : index
    %c0_7 = arith.constant 0 : index
    %10 = vector.load %arg12[%c0_6, %c0_7] : memref<8x512xf32, #tpu.memory_space<vmem>>, vector<8x512xf32>
    tpu.vector_store %arg12[%c0_6, %c0_7], %9 {strides = array<i32>} : memref<8x512xf32, #tpu.memory_space<vmem>>, vector<8x512xf32>,
    return
  }
  func.func @transform_0(%arg0: i32, %arg1: i32) -> (i32, i32) {
    %c0_i32 = arith.constant 0 : i32
    %c0_i32_0 = arith.constant 0 : i32
    return %arg0, %c0_i32 : i32, i32
  }
  func.func @transform_1(%arg0: i32, %arg1: i32) -> (i32, i32) {
    %c0_i32 = arith.constant 0 : i32
    %c0_i32_0 = arith.constant 0 : i32
    return %arg0, %c0_i32 : i32, i32
  }
  func.func @transform_2(%arg0: i32, %arg1: i32) -> (i32, i32) {
    %c0_i32 = arith.constant 0 : i32
    %c0_i32_0 = arith.constant 0 : i32
    %c0_i32_1 = arith.constant 0 : i32
    return %c0_i32, %c0_i32_0 : i32, i32
  }
  func.func @transform_3(%arg0: i32, %arg1: i32) -> (i32, i32) {
    %c0_i32 = arith.constant 0 : i32
    %c0_i32_0 = arith.constant 0 : i32
    %c0_i32_1 = arith.constant 0 : i32
    return %c0_i32, %c0_i32_0 : i32, i32
  }
  func.func @transform_4(%arg0: i32, %arg1: i32) -> (i32, i32) {
    %c0_i32 = arith.constant 0 : i32
    %c0_i32_0 = arith.constant 0 : i32
    %c0_i32_1 = arith.constant 0 : i32
    return %c0_i32, %c0_i32_0 : i32, i32
  }
  func.func @transform_5(%arg0: i32, %arg1: i32) -> (i32, i32) {
    %c0_i32 = arith.constant 0 : i32
    %c0_i32_0 = arith.constant 0 : i32
    %c0_i32_1 = arith.constant 0 : i32
    return %c0_i32, %c0_i32_0 : i32, i32
  }
  func.func @transform_6(%arg0: i32, %arg1: i32) -> (i32, i32) {
    %c0_i32 = arith.constant 0 : i32
    %c0_i32_0 = arith.constant 0 : i32
    %c0_i32_1 = arith.constant 0 : i32
    return %c0_i32, %c0_i32_0 : i32, i32
  }
  func.func @transform_7(%arg0: i32, %arg1: i32) -> (i32, i32) {
    %c0_i32 = arith.constant 0 : i32
    %c0_i32_0 = arith.constant 0 : i32
    %c0_i32_1 = arith.constant 0 : i32
    return %c0_i32, %c0_i32_0 : i32, i32
  }
  func.func @transform_8(%arg0: i32, %arg1: i32) -> (i32, i32) {
    %c0_i32 = arith.constant 0 : i32
    %c0_i32_0 = arith.constant 0 : i32
    return %c0_i32, %arg1 : i32, i32
  }
  func.func @transform_9(%arg0: i32, %arg1: i32) -> (i32, i32) {
    %c0_i32 = arith.constant 0 : i32
    %c0_i32_0 = arith.constant 0 : i32
    return %c0_i32, %arg1 : i32, i32
  }
  func.func @transform_10(%arg0: i32, %arg1: i32) -> (i32, i32) {
    %c0_i32 = arith.constant 0 : i32
    return %arg0, %arg1 : i32, i32
  }
  func.func @transform_11(%arg0: i32, %arg1: i32) -> (i32, i32) {
    %c0_i32 = arith.constant 0 : i32
    %c0_i32_0 = arith.constant 0 : i32
    return %arg0, %c0_i32 : i32, i32
  }
}

</mosaic_0001>

<llo_original>
// kernel: tpu_custom_call.1
$region0: #{tpu_custom_call.1}
  #allocation0 [shape = 'u32[]', space=smem, size = 0x4, offset = 0x4, fixed_abs, tag = 'smem constant byte address 0x4 - core index']
  #allocation1 [shape = 'u32[144,128]{1,0:T(1,128)}', space=vmem, size = 0x12000, scoped, tag = 'internal scratch']
  #allocation2 [shape = 'f32[8,128]{1,0:T(8,128)}', space=vmem, size = 0x1000, scoped, tag = 'scratch operand']
  %s0 = inlined_call_operand.hbm [shape: f32[8,1024], index: 0, kind: input, shape index: {}]
  %s1 = inlined_call_operand.hbm [shape: f32[8,128], index: 1, kind: input, shape index: {}]
  %s2 = inlined_call_operand.hbm [shape: bf16[1024,128], index: 2, kind: input, shape index: {}]
  %s3 = inlined_call_operand.vmem [shape: f32[1,128], index: 3, kind: input, shape index: {}]
  %s4 = inlined_call_operand.hbm [shape: bf16[128,256], index: 4, kind: input, shape index: {}]
  %s5 = inlined_call_operand.vmem [shape: f32[1,256], index: 5, kind: input, shape index: {}]
  %s6 = inlined_call_operand.hbm [shape: bf16[128,128], index: 6, kind: input, shape index: {}]
  %s7 = inlined_call_operand.vmem [shape: f32[1,128], index: 7, kind: input, shape index: {}]
  %s8 = inlined_call_operand.hbm [shape: bf16[128,1024], index: 8, kind: input, shape index: {}]
  %s9 = inlined_call_operand.vmem [shape: f32[1,1024], index: 9, kind: input, shape index: {}]
  %s10 = inlined_call_operand.hbm [shape: f32[8,1024], index: 10, kind: output, shape index: {0}]
  %s11 = inlined_call_operand.hbm [shape: f32[8,256], index: 11, kind: output, shape index: {1}]
  %12 = xla_tuple %s10, %s11
  %s13 = sld [smem:[#allocation0]]
  $region109: #{tpu_custom_call.1} parent=0
    _
  %s15 = ssub.s32 1, %s13
  %s16 = scalar_select 0, %s15, %s13
  $region1: #{tpu_custom_call.1} parent=0
    #allocation3 [shape = 'u8[32768]{0}', space=vmem, size = 0x8000, scoped, tag = 'input window, operand 0, single buffered']
    #allocation4 [shape = 's32[2]{0}', space=sflag, size = 0x8, scoped, tag = 'scoped memory for tpu_custom_call.1']
    #allocation5 [shape = 's32[2]{0}', space=sflag, size = 0x8, scoped, tag = 'scoped memory for tpu_custom_call.1']
    #allocation6 [shape = 'u8[4096]{0}', space=vmem, size = 0x1000, scoped, tag = 'input window, operand 1, single buffered']
    #allocation7 [shape = 's32[1]{0}', space=sflag, size = 0x4, scoped, tag = 'scoped memory for tpu_custom_call.1']
    #allocation8 [shape = 'u8[262144]{0}', space=vmem, size = 0x40000, scoped, tag = 'input window, operand 2, single buffered']
    #allocation9 [shape = 'u8[65536]{0}', space=vmem, size = 0x10000, scoped, tag = 'input window, operand 4, single buffered']
    #allocation10 [shape = 's32[1]{0}', space=sflag, size = 0x4, scoped, tag = 'scoped memory for tpu_custom_call.1']
    #allocation11 [shape = 'u8[32768]{0}', space=vmem, size = 0x8000, scoped, tag = 'input window, operand 6, single buffered']
    #allocation12 [shape = 'u8[262144]{0}', space=vmem, size = 0x40000, scoped, tag = 'input window, operand 8']
    #allocation13 [shape = 's32[2]{0}', space=sflag, size = 0x8, scoped, tag = 'scoped memory for tpu_custom_call.1']
    #allocation14 [shape = 'u8[32768]{0}', space=vmem, size = 0x8000, scoped, tag = 'output window, operand 0']
    #allocation15 [shape = 'u8[8192]{0}', space=vmem, size = 0x2000, scoped, tag = 'output window, operand 1, single buffered']
    #allocation16 [shape = 's32[1]{0}', space=sflag, size = 0x4, scoped, tag = 'scoped memory for tpu_custom_call.1']
    %17 = vsyncpa [#allocation4], 0
    %18 = vsyncpa [#allocation7], 0
    %19 = vsyncpa [#allocation10], 0
    %20 = vsyncpa [#allocation13], 0
    %s21 = scalar_lea.sflag [#allocation13], 1
    %22 = vsyncpa %s21, 0
    %23 = vsyncpa [#allocation5], 0
    %s24 = scalar_lea.sflag [#allocation5], 1
    %25 = vsyncpa %s24, 0
    %26 = vsyncpa [#allocation16], 0
    loop: start=0, step=1, limit=4
    $region2: #{tpu_custom_call.1} parent=1 // loop_pre_header
      _
    $region3: #{tpu_custom_call.1} parent=1 // loop_header
      %s28 = sphi 0, %s32
      %p29 = scmp.ge.s32.totalorder %s28, 4
      %s35 = sphi 0, %s47
      %s36 = sphi 0, %s43
      %s37 = sphi 0, %s35
      %s38 = sphi 0, %s36
      %s39 = sphi 0, %s37
      %s40 = sphi 0, %s38
      %s50 = sphi 0, %s52
      %s53 = sphi 0, %s50
      %s54 = sphi 0, %s53
      %s70 = sphi 0, %s54
      %s76 = sphi 0, %s78
      %s79 = sphi 0, %s76
      %s80 = sphi 0, %s79
      %s96 = sphi 0, %s80
      %s100 = sphi 0, %s100
      %s102 = sphi 0, %s100
      %s103 = sphi 0, %s102
      %s117 = sphi 0, %s103
      %s121 = sphi 0, %s121
      %s123 = sphi 0, %s121
      %s124 = sphi 0, %s123
      %s138 = sphi 0, %s124
      %s142 = sphi 0, %s142
      %s144 = sphi 0, %s142
      %s145 = sphi 0, %s144
      %s159 = sphi 0, %s145
      %s163 = sphi 0, %s163
      %s165 = sphi 0, %s163
      %s166 = sphi 0, %s165
      %s180 = sphi 0, %s166
      %s184 = sphi 0, %s184
      %s186 = sphi 0, %s184
      %s187 = sphi 0, %s186
      %s201 = sphi 0, %s187
      %s205 = sphi 0, %s205
      %s207 = sphi 0, %s205
      %s208 = sphi 0, %s207
      %s222 = sphi 0, %s208
      %s228 = sphi 0, %s230
      %s231 = sphi 0, %s228
      %s232 = sphi 0, %s231
      %s248 = sphi 0, %s232
      %s254 = sphi 0, %s256
      %s257 = sphi 0, %s254
      %s258 = sphi 0, %s257
      %s274 = sphi 0, %s258
      %s282 = sphi 0, %s284
      %s285 = sphi 0, %s282
      %s286 = sphi 0, %s285
      %s302 = sphi 0, %s286
      %s308 = sphi 0, %s310
      %s311 = sphi 0, %s308
      %s312 = sphi 0, %s311
      %s328 = sphi 0, %s312
    $region4: #{tpu_custom_call.1} parent=1 // loop_header_branch
      %31 = sbr.rel (%p29) target = $region8
    $region5: #{tpu_custom_call.1} parent=1 // loop_body
      %s33 = ssub.s32 %s28, 1
      %s34 = ssub.s32 %s28, 2
      %s41 = sadd.s32 1, %s36
      %p42 = scmp.ge.s32.totalorder %s41, 2
      %s43 = scalar_select %p42, 0, %s41
      %s44 = sadd.s32 1, %s35
      %s45 = scalar_select %p42, %s44, %s35
      %p46 = scmp.ge.s32.totalorder %s45, 1
      %s47 = scalar_select %p46, 0, %s45
      %s48 = ssub.s32 %s35, %s47
      %p49 = scmp.eq.s32.totalorder %s48, 0
      %s51 = sadd.s32 %s50, 1
      %s52 = scalar_select %p49, %s50, %s51
      %p55 = pneg %p49
      %p56 = scmp.eq.s32.totalorder %s28, 1
      %p57 = por %p55, %p56
      %p58 = scmp.ne.s32.totalorder %s50, %s53
      %p59 = scmp.eq.s32.totalorder %s28, 0
      %p60 = por %p58, %p59
      %p61 = scmp.ne.s32.totalorder %s50, %s53
      %p62 = scmp.eq.s32.totalorder %s33, 1
      %p63 = por %p61, %p62
      %p64 = scmp.ne.s32.totalorder %s53, %s54
      %p65 = scmp.eq.s32.totalorder %s33, 0
      %p66 = por %p64, %p65
      %p67 = scmp.ne.s32.totalorder %s53, %s54
      %p68 = scmp.eq.s32.totalorder %s34, 1
      %p69 = por %p67, %p68
      %p71 = scmp.ne.s32.totalorder %s54, %s70
      %p72 = scmp.eq.s32.totalorder %s34, 0
      %p73 = por %p71, %p72
      %s74 = ssub.s32 %s35, %s47
      %p75 = scmp.eq.s32.totalorder %s74, 0
      %s77 = sadd.s32 %s76, 1
      %s78 = scalar_select %p75, %s76, %s77
      %p81 = pneg %p75
      %p82 = scmp.eq.s32.totalorder %s28, 1
      %p83 = por %p81, %p82
      %p84 = scmp.ne.s32.totalorder %s76, %s79
      %p85 = scmp.eq.s32.totalorder %s28, 0
      %p86 = por %p84, %p85
      %p87 = scmp.ne.s32.totalorder %s76, %s79
      %p88 = scmp.eq.s32.totalorder %s33, 1
      %p89 = por %p87, %p88
      %p90 = scmp.ne.s32.totalorder %s79, %s80
      %p91 = scmp.eq.s32.totalorder %s33, 0
      %p92 = por %p90, %p91
      %p93 = scmp.ne.s32.totalorder %s79, %s80
      %p94 = scmp.eq.s32.totalorder %s34, 1
      %p95 = por %p93, %p94
      %p97 = scmp.ne.s32.totalorder %s80, %s96
      %p98 = scmp.eq.s32.totalorder %s34, 0
      %p99 = por %p97, %p98
      %s101 = sadd.s32 %s100, 1
      %p104 = scmp.eq.s32.totalorder %s28, 1
      %p105 = scmp.ne.s32.totalorder %s100, %s102
      %p106 = scmp.eq.s32.totalorder %s28, 0
      %p107 = por %p105, %p106
      %p108 = scmp.ne.s32.totalorder %s100, %s102
      %p109 = scmp.eq.s32.totalorder %s33, 1
      %p110 = por %p108, %p109
      %p111 = scmp.ne.s32.totalorder %s102, %s103
      %p112 = scmp.eq.s32.totalorder %s33, 0
      %p113 = por %p111, %p112
      %p114 = scmp.ne.s32.totalorder %s102, %s103
      %p115 = scmp.eq.s32.totalorder %s34, 1
      %p116 = por %p114, %p115
      %p118 = scmp.ne.s32.totalorder %s103, %s117
      %p119 = scmp.eq.s32.totalorder %s34, 0
      %p120 = por %p118, %p119
      %s122 = sadd.s32 %s121, 1
      %p125 = scmp.eq.s32.totalorder %s28, 1
      %p126 = scmp.ne.s32.totalorder %s121, %s123
      %p127 = scmp.eq.s32.totalorder %s28, 0
      %p128 = por %p126, %p127
      %p129 = scmp.ne.s32.totalorder %s121, %s123
      %p130 = scmp.eq.s32.totalorder %s33, 1
      %p131 = por %p129, %p130
      %p132 = scmp.ne.s32.totalorder %s123, %s124
      %p133 = scmp.eq.s32.totalorder %s33, 0
      %p134 = por %p132, %p133
      %p135 = scmp.ne.s32.totalorder %s123, %s124
      %p136 = scmp.eq.s32.totalorder %s34, 1
      %p137 = por %p135, %p136
      %p139 = scmp.ne.s32.totalorder %s124, %s138
      %p140 = scmp.eq.s32.totalorder %s34, 0
      %p141 = por %p139, %p140
      %s143 = sadd.s32 %s142, 1
      %p146 = scmp.eq.s32.totalorder %s28, 1
      %p147 = scmp.ne.s32.totalorder %s142, %s144
      %p148 = scmp.eq.s32.totalorder %s28, 0
      %p149 = por %p147, %p148
      %p150 = scmp.ne.s32.totalorder %s142, %s144
      %p151 = scmp.eq.s32.totalorder %s33, 1
      %p152 = por %p150, %p151
      %p153 = scmp.ne.s32.totalorder %s144, %s145
      %p154 = scmp.eq.s32.totalorder %s33, 0
      %p155 = por %p153, %p154
      %p156 = scmp.ne.s32.totalorder %s144, %s145
      %p157 = scmp.eq.s32.totalorder %s34, 1
      %p158 = por %p156, %p157
      %p160 = scmp.ne.s32.totalorder %s145, %s159
      %p161 = scmp.eq.s32.totalorder %s34, 0
      %p162 = por %p160, %p161
      %s164 = sadd.s32 %s163, 1
      %p167 = scmp.eq.s32.totalorder %s28, 1
      %p168 = scmp.ne.s32.totalorder %s163, %s165
      %p169 = scmp.eq.s32.totalorder %s28, 0
      %p170 = por %p168, %p169
      %p171 = scmp.ne.s32.totalorder %s163, %s165
      %p172 = scmp.eq.s32.totalorder %s33, 1
      %p173 = por %p171, %p172
      %p174 = scmp.ne.s32.totalorder %s165, %s166
      %p175 = scmp.eq.s32.totalorder %s33, 0
      %p176 = por %p174, %p175
      %p177 = scmp.ne.s32.totalorder %s165, %s166
      %p178 = scmp.eq.s32.totalorder %s34, 1
      %p179 = por %p177, %p178
      %p181 = scmp.ne.s32.totalorder %s166, %s180
      %p182 = scmp.eq.s32.totalorder %s34, 0
      %p183 = por %p181, %p182
      %s185 = sadd.s32 %s184, 1
      %p188 = scmp.eq.s32.totalorder %s28, 1
      %p189 = scmp.ne.s32.totalorder %s184, %s186
      %p190 = scmp.eq.s32.totalorder %s28, 0
      %p191 = por %p189, %p190
      %p192 = scmp.ne.s32.totalorder %s184, %s186
      %p193 = scmp.eq.s32.totalorder %s33, 1
      %p194 = por %p192, %p193
      %p195 = scmp.ne.s32.totalorder %s186, %s187
      %p196 = scmp.eq.s32.totalorder %s33, 0
      %p197 = por %p195, %p196
      %p198 = scmp.ne.s32.totalorder %s186, %s187
      %p199 = scmp.eq.s32.totalorder %s34, 1
      %p200 = por %p198, %p199
      %p202 = scmp.ne.s32.totalorder %s187, %s201
      %p203 = scmp.eq.s32.totalorder %s34, 0
      %p204 = por %p202, %p203
      %s206 = sadd.s32 %s205, 1
      %p209 = scmp.eq.s32.totalorder %s28, 1
      %p210 = scmp.ne.s32.totalorder %s205, %s207
      %p211 = scmp.eq.s32.totalorder %s28, 0
      %p212 = por %p210, %p211
      %p213 = scmp.ne.s32.totalorder %s205, %s207
      %p214 = scmp.eq.s32.totalorder %s33, 1
      %p215 = por %p213, %p214
      %p216 = scmp.ne.s32.totalorder %s207, %s208
      %p217 = scmp.eq.s32.totalorder %s33, 0
      %p218 = por %p216, %p217
      %p219 = scmp.ne.s32.totalorder %s207, %s208
      %p220 = scmp.eq.s32.totalorder %s34, 1
      %p221 = por %p219, %p220
      %p223 = scmp.ne.s32.totalorder %s208, %s222
      %p224 = scmp.eq.s32.totalorder %s34, 0
      %p225 = por %p223, %p224
      %s226 = ssub.s32 %s36, %s43
      %p227 = scmp.eq.s32.totalorder %s226, 0
      %s229 = sadd.s32 %s228, 1
      %s230 = scalar_select %p227, %s228, %s229
      %p233 = pneg %p227
      %p234 = scmp.eq.s32.totalorder %s28, 1
      %p235 = por %p233, %p234
      %p236 = scmp.ne.s32.totalorder %s228, %s231
      %p237 = scmp.eq.s32.totalorder %s28, 0
      %p238 = por %p236, %p237
      %p239 = scmp.ne.s32.totalorder %s228, %s231
      %p240 = scmp.eq.s32.totalorder %s33, 1
      %p241 = por %p239, %p240
      %p242 = scmp.ne.s32.totalorder %s231, %s232
      %p243 = scmp.eq.s32.totalorder %s33, 0
      %p244 = por %p242, %p243
      %p245 = scmp.ne.s32.totalorder %s231, %s232
      %p246 = scmp.eq.s32.totalorder %s34, 1
      %p247 = por %p245, %p246
      %p249 = scmp.ne.s32.totalorder %s232, %s248
      %p250 = scmp.eq.s32.totalorder %s34, 0
      %p251 = por %p249, %p250
      %s252 = ssub.s32 %s36, %s43
      %p253 = scmp.eq.s32.totalorder %s252, 0
      %s255 = sadd.s32 %s254, 1
      %s256 = scalar_select %p253, %s254, %s255
      %p259 = pneg %p253
      %p260 = scmp.eq.s32.totalorder %s28, 1
      %p261 = por %p259, %p260
      %p262 = scmp.ne.s32.totalorder %s254, %s257
      %p263 = scmp.eq.s32.totalorder %s28, 0
      %p264 = por %p262, %p263
      %p265 = scmp.ne.s32.totalorder %s254, %s257
      %p266 = scmp.eq.s32.totalorder %s33, 1
      %p267 = por %p265, %p266
      %p268 = scmp.ne.s32.totalorder %s257, %s258
      %p269 = scmp.eq.s32.totalorder %s33, 0
      %p270 = por %p268, %p269
      %p271 = scmp.ne.s32.totalorder %s257, %s258
      %p272 = scmp.eq.s32.totalorder %s34, 1
      %p273 = por %p271, %p272
      %p275 = scmp.ne.s32.totalorder %s258, %s274
      %p276 = scmp.eq.s32.totalorder %s34, 0
      %p277 = por %p275, %p276
      %s278 = ssub.s32 %s35, %s47
      %s279 = ssub.s32 %s36, %s43
      %s280 = sor.u32 %s278, %s279
      %p281 = scmp.eq.s32.totalorder %s280, 0
      %s283 = sadd.s32 %s282, 1
      %s284 = scalar_select %p281, %s282, %s283
      %p287 = pneg %p281
      %p288 = scmp.eq.s32.totalorder %s28, 1
      %p289 = por %p287, %p288
      %p290 = scmp.ne.s32.totalorder %s282, %s285
      %p291 = scmp.eq.s32.totalorder %s28, 0
      %p292 = por %p290, %p291
      %p293 = scmp.ne.s32.totalorder %s282, %s285
      %p294 = scmp.eq.s32.totalorder %s33, 1
      %p295 = por %p293, %p294
      %p296 = scmp.ne.s32.totalorder %s285, %s286
      %p297 = scmp.eq.s32.totalorder %s33, 0
      %p298 = por %p296, %p297
      %p299 = scmp.ne.s32.totalorder %s285, %s286
      %p300 = scmp.eq.s32.totalorder %s34, 1
      %p301 = por %p299, %p300
      %p303 = scmp.ne.s32.totalorder %s286, %s302
      %p304 = scmp.eq.s32.totalorder %s34, 0
      %p305 = por %p303, %p304
      %s306 = ssub.s32 %s35, %s47
      %p307 = scmp.eq.s32.totalorder %s306, 0
      %s309 = sadd.s32 %s308, 1
      %s310 = scalar_select %p307, %s308, %s309
      %p313 = pneg %p307
      %p314 = scmp.eq.s32.totalorder %s28, 1
      %p315 = por %p313, %p314
      %p316 = scmp.ne.s32.totalorder %s308, %s311
      %p317 = scmp.eq.s32.totalorder %s28, 0
      %p318 = por %p316, %p317
      %p319 = scmp.ne.s32.totalorder %s308, %s311
      %p320 = scmp.eq.s32.totalorder %s33, 1
      %p321 = por %p319, %p320
      %p322 = scmp.ne.s32.totalorder %s311, %s312
      %p323 = scmp.eq.s32.totalorder %s33, 0
      %p324 = por %p322, %p323
      %p325 = scmp.ne.s32.totalorder %s311, %s312
      %p326 = scmp.eq.s32.totalorder %s34, 1
      %p327 = por %p325, %p326
      %p329 = scmp.ne.s32.totalorder %s312, %s328
      %p330 = scmp.eq.s32.totalorder %s34, 0
      %p331 = por %p329, %p330
      %p332 = scmp.le.s32.totalorder 1, %s28
      %p333 = scmp.lt.s32.totalorder %s28, 3
      %p334 = pnand %p332, %p333
      %p335 = pneg %p334
      // Predicated region
      $region9: #{tpu_custom_call.1} parent=5 // pred_check
        _
      $region10: #{tpu_custom_call.1} parent=5 // pred_check_branch
        %337 = sbr.rel (%p334) target = $region12
      $region11: #{tpu_custom_call.1} parent=5 // pred_region
        %s338 = ssub.s32 %s28, 1
        // Predicated region
        $region13: #{tpu_custom_call.1} parent=11 // pred_check
          %p339 = pneg %p66
        $region14: #{tpu_custom_call.1} parent=11 // pred_check_branch
          %341 = sbr.rel (%p339) target = $region16
        $region15: #{tpu_custom_call.1} parent=11 // pred_region
          %s343 = ssub.s32 1024, 1024
          %344 = vsyncadd [#allocation4], %s343
          %s345 = smul.addr %s37, 8
          %s346 = smul.addr %s345, 128
          %s347 = scalar_lea.hbm %s0, %s346
          %s349 = sshll.u32 [#allocation3], 4
          %s350 = int_to_ptr.vmem [resolvable:$true] %s349
          %352 = dma.hbm_to_vmem [thread:$0]  %s347, 1024, %s350, [#allocation4]
        $region16: #{tpu_custom_call.1} parent=11 // pred_fallthru
          _
        // Predicated region
        $region17: #{tpu_custom_call.1} parent=11 // pred_check
          %p353 = pneg %p92
        $region18: #{tpu_custom_call.1} parent=11 // pred_check_branch
          %355 = sbr.rel (%p353) target = $region20
        $region19: #{tpu_custom_call.1} parent=11 // pred_region
          %s357 = ssub.s32 128, 128
          %358 = vsyncadd [#allocation7], %s357
          %s359 = smul.addr %s37, 128
          %s360 = scalar_lea.hbm %s1, %s359
          %s362 = sshll.u32 [#allocation6], 4
          %s363 = int_to_ptr.vmem [resolvable:$true] %s362
          %365 = dma.hbm_to_vmem [thread:$0]  %s360, 128, %s363, [#allocation7]
        $region20: #{tpu_custom_call.1} parent=11 // pred_fallthru
          _
        // Predicated region
        $region21: #{tpu_custom_call.1} parent=11 // pred_check
          %p366 = pneg %p113
        $region22: #{tpu_custom_call.1} parent=11 // pred_check_branch
          %368 = sbr.rel (%p366) target = $region24
        $region23: #{tpu_custom_call.1} parent=11 // pred_region
          %s370 = ssub.s32 8192, 8192
          %371 = vsyncadd [#allocation7], %s370
          %s372 = sshll.u32 [#allocation8], 4
          %s373 = int_to_ptr.vmem [resolvable:$true] %s372
          %378 = dma.hbm_to_vmem [thread:$0]  %s2, 8192, %s373, [#allocation7], 64, 64, 4
        $region24: #{tpu_custom_call.1} parent=11 // pred_fallthru
          _
        // Predicated region
        $region25: #{tpu_custom_call.1} parent=11 // pred_check
          %p379 = pneg %p134
        $region26: #{tpu_custom_call.1} parent=11 // pred_check_branch
          %381 = sbr.rel (%p379) target = $region28
        $region27: #{tpu_custom_call.1} parent=11 // pred_region
          _
        $region28: #{tpu_custom_call.1} parent=11 // pred_fallthru
          _
        // Predicated region
        $region29: #{tpu_custom_call.1} parent=11 // pred_check
          %p382 = pneg %p155
        $region30: #{tpu_custom_call.1} parent=11 // pred_check_branch
          %384 = sbr.rel (%p382) target = $region32
        $region31: #{tpu_custom_call.1} parent=11 // pred_region
          %s386 = ssub.s32 2048, 2048
          %387 = vsyncadd [#allocation10], %s386
          %s388 = sshll.u32 [#allocation9], 4
          %s389 = int_to_ptr.vmem [resolvable:$true] %s388
          %394 = dma.hbm_to_vmem [thread:$0]  %s4, 2048, %s389, [#allocation10], 128, 128, 8
        $region32: #{tpu_custom_call.1} parent=11 // pred_fallthru
          _
        // Predicated region
        $region33: #{tpu_custom_call.1} parent=11 // pred_check
          %p395 = pneg %p176
        $region34: #{tpu_custom_call.1} parent=11 // pred_check_branch
          %397 = sbr.rel (%p395) target = $region36
        $region35: #{tpu_custom_call.1} parent=11 // pred_region
          _
        $region36: #{tpu_custom_call.1} parent=11 // pred_fallthru
          _
        // Predicated region
        $region37: #{tpu_custom_call.1} parent=11 // pred_check
          %p398 = pneg %p197
        $region38: #{tpu_custom_call.1} parent=11 // pred_check_branch
          %400 = sbr.rel (%p398) target = $region40
        $region39: #{tpu_custom_call.1} parent=11 // pred_region
          %s402 = ssub.s32 1024, 1024
          %403 = vsyncadd [#allocation10], %s402
          %s404 = sshll.u32 [#allocation11], 4
          %s405 = int_to_ptr.vmem [resolvable:$true] %s404
          %410 = dma.hbm_to_vmem [thread:$0]  %s6, 1024, %s405, [#allocation10], 64, 64, 4
        $region40: #{tpu_custom_call.1} parent=11 // pred_fallthru
          _
        // Predicated region
        $region41: #{tpu_custom_call.1} parent=11 // pred_check
          %p411 = pneg %p218
        $region42: #{tpu_custom_call.1} parent=11 // pred_check_branch
          %413 = sbr.rel (%p411) target = $region44
        $region43: #{tpu_custom_call.1} parent=11 // pred_region
          _
        $region44: #{tpu_custom_call.1} parent=11 // pred_fallthru
          _
      $region12: #{tpu_custom_call.1} parent=5 // pred_fallthru
        _
      %p414 = scmp.lt.s32.totalorder %s28, 2
      // Predicated region
      $region45: #{tpu_custom_call.1} parent=5 // pred_check
        %p415 = pneg %p414
      $region46: #{tpu_custom_call.1} parent=5 // pred_check_branch
        %417 = sbr.rel (%p415) target = $region48
      $region47: #{tpu_custom_call.1} parent=5 // pred_region
        // Predicated region
        $region49: #{tpu_custom_call.1} parent=47 // pred_check
          %p418 = pneg %p238
        $region50: #{tpu_custom_call.1} parent=47 // pred_check_branch
          %420 = sbr.rel (%p418) target = $region52
        $region51: #{tpu_custom_call.1} parent=47 // pred_region
          %s421 = sand.u32 %s228, 1
          %s422 = scalar_lea.sflag [#allocation13], %s421
          %s423 = sand.u32 %s228, 1
          %s424 = smul.addr %s423, 256
          %s425 = scalar_lea.vmem [#allocation12], %s424
          %s426 = smul.u32 4, %s36
          %s428 = ssub.s32 4096, 4096
          %429 = vsyncadd %s422, %s428
          %s430 = smul.addr %s426, 64
          %s431 = scalar_lea.hbm %s8, %s430
          %s432 = sshll.u32 %s425, 4
          %s433 = int_to_ptr.vmem [resolvable:$true] %s432
          %438 = dma.hbm_to_vmem [thread:$0]  %s431, 4096, %s433, %s422, 512, 256, 16
        $region52: #{tpu_custom_call.1} parent=47 // pred_fallthru
          _
        // Predicated region
        $region53: #{tpu_custom_call.1} parent=47 // pred_check
          %p439 = pneg %p264
        $region54: #{tpu_custom_call.1} parent=47 // pred_check_branch
          %441 = sbr.rel (%p439) target = $region56
        $region55: #{tpu_custom_call.1} parent=47 // pred_region
          %s442 = smul.u32 4, %s36
          %p443 = scmp.lt.s32.totalorder %s442, 7
          %s444 = scalar_select %p443, %s442, 7
          %s445 = scalar_lea.vmem %s9, %s444
          %s446 = smul.u32 4, %s36
        $region56: #{tpu_custom_call.1} parent=47 // pred_fallthru
          _
      $region48: #{tpu_custom_call.1} parent=5 // pred_fallthru
        _
      %p447 = scmp.le.s32.totalorder 1, %s28
      %p448 = scmp.lt.s32.totalorder %s28, 3
      %p449 = pnand %p447, %p448
      %p450 = pneg %p449
      // Predicated region
      $region57: #{tpu_custom_call.1} parent=5 // pred_check
        _
      $region58: #{tpu_custom_call.1} parent=5 // pred_check_branch
        %452 = sbr.rel (%p449) target = $region60
      $region59: #{tpu_custom_call.1} parent=5 // pred_region
        %s453 = ssub.s32 %s28, 1
        // Predicated region
        $region61: #{tpu_custom_call.1} parent=59 // pred_check
          %p454 = pneg %p66
        $region62: #{tpu_custom_call.1} parent=59 // pred_check_branch
          %456 = sbr.rel (%p454) target = $region64
        $region63: #{tpu_custom_call.1} parent=59 // pred_region
          %457 = dma.done [#allocation4], 1024
        $region64: #{tpu_custom_call.1} parent=59 // pred_fallthru
          _
        // Predicated region
        $region65: #{tpu_custom_call.1} parent=59 // pred_check
          %p458 = pneg %p92
        $region66: #{tpu_custom_call.1} parent=59 // pred_check_branch
          %460 = sbr.rel (%p458) target = $region68
        $region67: #{tpu_custom_call.1} parent=59 // pred_region
          %461 = dma.done [#allocation7], 128
        $region68: #{tpu_custom_call.1} parent=59 // pred_fallthru
          _
        // Predicated region
        $region69: #{tpu_custom_call.1} parent=59 // pred_check
          %p462 = pneg %p113
        $region70: #{tpu_custom_call.1} parent=59 // pred_check_branch
          %464 = sbr.rel (%p462) target = $region72
        $region71: #{tpu_custom_call.1} parent=59 // pred_region
          %465 = dma.done [#allocation7], 8192
        $region72: #{tpu_custom_call.1} parent=59 // pred_fallthru
          _
        // Predicated region
        $region73: #{tpu_custom_call.1} parent=59 // pred_check
          %p466 = pneg %p155
        $region74: #{tpu_custom_call.1} parent=59 // pred_check_branch
          %468 = sbr.rel (%p466) target = $region76
        $region75: #{tpu_custom_call.1} parent=59 // pred_region
          %469 = dma.done [#allocation10], 2048
        $region76: #{tpu_custom_call.1} parent=59 // pred_fallthru
          _
        // Predicated region
        $region77: #{tpu_custom_call.1} parent=59 // pred_check
          %p470 = pneg %p197
        $region78: #{tpu_custom_call.1} parent=59 // pred_check_branch
          %472 = sbr.rel (%p470) target = $region80
        $region79: #{tpu_custom_call.1} parent=59 // pred_region
          %473 = dma.done [#allocation10], 1024
        $region80: #{tpu_custom_call.1} parent=59 // pred_fallthru
          _
        %s474 = sand.u32 %s231, 1
        %s475 = scalar_lea.sflag [#allocation13], %s474
        %s476 = sand.u32 %s231, 1
        %s477 = smul.addr %s476, 256
        %s478 = scalar_lea.vmem [#allocation12], %s477
        // Predicated region
        $region81: #{tpu_custom_call.1} parent=59 // pred_check
          %p479 = pneg %p244
        $region82: #{tpu_custom_call.1} parent=59 // pred_check_branch
          %481 = sbr.rel (%p479) target = $region84
        $region83: #{tpu_custom_call.1} parent=59 // pred_region
          %482 = dma.done %s475, 4096
        $region84: #{tpu_custom_call.1} parent=59 // pred_fallthru
          _
        %p483 = pneg %p66
        %p484 = pneg %p63
        %p485 = pneg %p92
        %p486 = pneg %p89
        %p487 = pneg %p113
        %p488 = pneg %p110
        %p489 = pneg %p134
        %p490 = pneg %p131
        %p491 = pneg %p155
        %p492 = pneg %p152
        %p493 = pneg %p176
        %p494 = pneg %p173
        %p495 = pneg %p197
        %p496 = pneg %p194
        %p497 = pneg %p218
        %p498 = pneg %p215
        %s499 = sand.u32 %s231, 1
        %s500 = scalar_lea.sflag [#allocation13], %s499
        %s501 = sand.u32 %s231, 1
        %s502 = smul.addr %s501, 256
        %s503 = scalar_lea.vmem [#allocation12], %s502
        %p504 = pneg %p244
        %p505 = pneg %p241
        %s506 = smul.u32 4, %s38
        %p507 = scmp.lt.s32.totalorder %s506, 7
        %s508 = scalar_select %p507, %s506, 7
        %s509 = scalar_lea.vmem %s9, %s508
        %p510 = pneg %p270
        %p511 = pneg %p267
        %p512 = pneg %p298
        %p513 = pneg %p295
        %s514 = sand.u32 %s285, 1
        %s515 = scalar_lea.sflag [#allocation5], %s514
        %s516 = sand.u32 %s285, 1
        %s517 = smul.addr %s516, 32
        %s518 = scalar_lea.vmem [#allocation14], %s517
        %p519 = pneg %p324
        %p520 = pneg %p321
        %s521 = smul.u32 4, %s38
        %s522 = smul.u32 4, %s38
        %p523 = scmp.lt.s32.totalorder %s522, 7
        %s524 = scalar_select %p523, %s522, 7
        %s525 = scalar_lea.vmem %s9, %s524
        %s526 = smul.u32 4, %s38
        %s527 = smul.u32 4, %s38
        %p529 = scmp.eq.s32.totalorder %s38, 0
        // Predicated region
        $region85: #{tpu_custom_call.1} parent=59 // pred_check
          %p530 = pneg %p529
        $region86: #{tpu_custom_call.1} parent=59 // pred_check_branch
          %532 = sbr.rel (%p530) target = $region88
        $region87: #{tpu_custom_call.1} parent=59 // pred_region
          %v533 = vld [vmem:[#allocation3] sm:$0xff]
          %v534 = vld [vmem:[#allocation3 + $0x8] sm:$0xff]
          %v535 = vld [vmem:[#allocation3 + $0x10] sm:$0xff]
          %v536 = vld [vmem:[#allocation3 + $0x18] sm:$0xff]
          %v537 = vld [vmem:[#allocation3 + $0x20] sm:$0xff]
          %v538 = vld [vmem:[#allocation3 + $0x28] sm:$0xff]
          %v539 = vld [vmem:[#allocation3 + $0x30] sm:$0xff]
          %v540 = vld [vmem:[#allocation3 + $0x38] sm:$0xff]
          %v541 = vpack.c.bf16 %v533, %v533
          %v542 = vpack.c.bf16 %v534, %v534
          %v543 = vpack.c.bf16 %v535, %v535
          %v544 = vpack.c.bf16 %v536, %v536
          %v545 = vpack.c.bf16 %v537, %v537
          %v546 = vpack.c.bf16 %v538, %v538
          %v547 = vpack.c.bf16 %v539, %v539
          %v548 = vpack.c.bf16 %v540, %v540
          %v549 = vld [vmem:[#allocation8] sm:$0xf]
          %v550 = vld [vmem:[#allocation8 + $0x4] sm:$0xf]
          %v551 = vld [vmem:[#allocation8 + $0x8] sm:$0xf]
          %v552 = vld [vmem:[#allocation8 + $0xc] sm:$0xf]
          %v553 = vld [vmem:[#allocation8 + $0x10] sm:$0xf]
          %v554 = vld [vmem:[#allocation8 + $0x14] sm:$0xf]
          %v555 = vld [vmem:[#allocation8 + $0x18] sm:$0xf]
          %v556 = vld [vmem:[#allocation8 + $0x1c] sm:$0xf]
          %v557 = vld [vmem:[#allocation8 + $0x20] sm:$0xf]
          %v558 = vld [vmem:[#allocation8 + $0x24] sm:$0xf]
          %v559 = vld [vmem:[#allocation8 + $0x28] sm:$0xf]
          %v560 = vld [vmem:[#allocation8 + $0x2c] sm:$0xf]
          %v561 = vld [vmem:[#allocation8 + $0x30] sm:$0xf]
          %v562 = vld [vmem:[#allocation8 + $0x34] sm:$0xf]
          %v563 = vld [vmem:[#allocation8 + $0x38] sm:$0xf]
          %v564 = vld [vmem:[#allocation8 + $0x3c] sm:$0xf]
          %v565 = vld [vmem:[#allocation8 + $0x40] sm:$0xf]
          %v566 = vld [vmem:[#allocation8 + $0x44] sm:$0xf]
          %v567 = vld [vmem:[#allocation8 + $0x48] sm:$0xf]
          %v568 = vld [vmem:[#allocation8 + $0x4c] sm:$0xf]
          %v569 = vld [vmem:[#allocation8 + $0x50] sm:$0xf]
          %v570 = vld [vmem:[#allocation8 + $0x54] sm:$0xf]
          %v571 = vld [vmem:[#allocation8 + $0x58] sm:$0xf]
          %v572 = vld [vmem:[#allocation8 + $0x5c] sm:$0xf]
          %v573 = vld [vmem:[#allocation8 + $0x60] sm:$0xf]
          %v574 = vld [vmem:[#allocation8 + $0x64] sm:$0xf]
          %v575 = vld [vmem:[#allocation8 + $0x68] sm:$0xf]
          %v576 = vld [vmem:[#allocation8 + $0x6c] sm:$0xf]
          %v577 = vld [vmem:[#allocation8 + $0x70] sm:$0xf]
          %v578 = vld [vmem:[#allocation8 + $0x74] sm:$0xf]
          %v579 = vld [vmem:[#allocation8 + $0x78] sm:$0xf]
          %v580 = vld [vmem:[#allocation8 + $0x7c] sm:$0xf]
          %v581 = vld [vmem:[#allocation8 + $0x80] sm:$0xf]
          %v582 = vld [vmem:[#allocation8 + $0x84] sm:$0xf]
          %v583 = vld [vmem:[#allocation8 + $0x88] sm:$0xf]
          %v584 = vld [vmem:[#allocation8 + $0x8c] sm:$0xf]
          %v585 = vld [vmem:[#allocation8 + $0x90] sm:$0xf]
          %v586 = vld [vmem:[#allocation8 + $0x94] sm:$0xf]
          %v587 = vld [vmem:[#allocation8 + $0x98] sm:$0xf]
          %v588 = vld [vmem:[#allocation8 + $0x9c] sm:$0xf]
          %v589 = vld [vmem:[#allocation8 + $0xa0] sm:$0xf]
          %v590 = vld [vmem:[#allocation8 + $0xa4] sm:$0xf]
          %v591 = vld [vmem:[#allocation8 + $0xa8] sm:$0xf]
          %v592 = vld [vmem:[#allocation8 + $0xac] sm:$0xf]
          %v593 = vld [vmem:[#allocation8 + $0xb0] sm:$0xf]
          %v594 = vld [vmem:[#allocation8 + $0xb4] sm:$0xf]
          %v595 = vld [vmem:[#allocation8 + $0xb8] sm:$0xf]
          %v596 = vld [vmem:[#allocation8 + $0xbc] sm:$0xf]
          %v597 = vld [vmem:[#allocation8 + $0xc0] sm:$0xf]
          %v598 = vld [vmem:[#allocation8 + $0xc4] sm:$0xf]
          %v599 = vld [vmem:[#allocation8 + $0xc8] sm:$0xf]
          %v600 = vld [vmem:[#allocation8 + $0xcc] sm:$0xf]
          %v601 = vld [vmem:[#allocation8 + $0xd0] sm:$0xf]
          %v602 = vld [vmem:[#allocation8 + $0xd4] sm:$0xf]
          %v603 = vld [vmem:[#allocation8 + $0xd8] sm:$0xf]
          %v604 = vld [vmem:[#allocation8 + $0xdc] sm:$0xf]
          %v605 = vld [vmem:[#allocation8 + $0xe0] sm:$0xf]
          %v606 = vld [vmem:[#allocation8 + $0xe4] sm:$0xf]
          %v607 = vld [vmem:[#allocation8 + $0xe8] sm:$0xf]
          %v608 = vld [vmem:[#allocation8 + $0xec] sm:$0xf]
          %v609 = vld [vmem:[#allocation8 + $0xf0] sm:$0xf]
          %v610 = vld [vmem:[#allocation8 + $0xf4] sm:$0xf]
          %v611 = vld [vmem:[#allocation8 + $0xf8] sm:$0xf]
          %v612 = vld [vmem:[#allocation8 + $0xfc] sm:$0xf]
          %v613 = vld [vmem:[#allocation8 + $0x100] sm:$0xf]
          %v614 = vld [vmem:[#allocation8 + $0x104] sm:$0xf]
          %v615 = vld [vmem:[#allocation8 + $0x108] sm:$0xf]
          %v616 = vld [vmem:[#allocation8 + $0x10c] sm:$0xf]
          %v617 = vld [vmem:[#allocation8 + $0x110] sm:$0xf]
          %v618 = vld [vmem:[#allocation8 + $0x114] sm:$0xf]
          %v619 = vld [vmem:[#allocation8 + $0x118] sm:$0xf]
          %v620 = vld [vmem:[#allocation8 + $0x11c] sm:$0xf]
          %v621 = vld [vmem:[#allocation8 + $0x120] sm:$0xf]
          %v622 = vld [vmem:[#allocation8 + $0x124] sm:$0xf]
          %v623 = vld [vmem:[#allocation8 + $0x128] sm:$0xf]
          %v624 = vld [vmem:[#allocation8 + $0x12c] sm:$0xf]
          %v625 = vld [vmem:[#allocation8 + $0x130] sm:$0xf]
          %v626 = vld [vmem:[#allocation8 + $0x134] sm:$0xf]
          %v627 = vld [vmem:[#allocation8 + $0x138] sm:$0xf]
          %v628 = vld [vmem:[#allocation8 + $0x13c] sm:$0xf]
          %v629 = vld [vmem:[#allocation8 + $0x140] sm:$0xf]
          %v630 = vld [vmem:[#allocation8 + $0x144] sm:$0xf]
          %v631 = vld [vmem:[#allocation8 + $0x148] sm:$0xf]
          %v632 = vld [vmem:[#allocation8 + $0x14c] sm:$0xf]
          %v633 = vld [vmem:[#allocation8 + $0x150] sm:$0xf]
          %v634 = vld [vmem:[#allocation8 + $0x154] sm:$0xf]
          %v635 = vld [vmem:[#allocation8 + $0x158] sm:$0xf]
          %v636 = vld [vmem:[#allocation8 + $0x15c] sm:$0xf]
          %v637 = vld [vmem:[#allocation8 + $0x160] sm:$0xf]
          %v638 = vld [vmem:[#allocation8 + $0x164] sm:$0xf]
          %v639 = vld [vmem:[#allocation8 + $0x168] sm:$0xf]
          %v640 = vld [vmem:[#allocation8 + $0x16c] sm:$0xf]
          %v641 = vld [vmem:[#allocation8 + $0x170] sm:$0xf]
          %v642 = vld [vmem:[#allocation8 + $0x174] sm:$0xf]
          %v643 = vld [vmem:[#allocation8 + $0x178] sm:$0xf]
          %v644 = vld [vmem:[#allocation8 + $0x17c] sm:$0xf]
          %v645 = vld [vmem:[#allocation8 + $0x180] sm:$0xf]
          %v646 = vld [vmem:[#allocation8 + $0x184] sm:$0xf]
          %v647 = vld [vmem:[#allocation8 + $0x188] sm:$0xf]
          %v648 = vld [vmem:[#allocation8 + $0x18c] sm:$0xf]
          %v649 = vld [vmem:[#allocation8 + $0x190] sm:$0xf]
          %v650 = vld [vmem:[#allocation8 + $0x194] sm:$0xf]
          %v651 = vld [vmem:[#allocation8 + $0x198] sm:$0xf]
          %v652 = vld [vmem:[#allocation8 + $0x19c] sm:$0xf]
          %v653 = vld [vmem:[#allocation8 + $0x1a0] sm:$0xf]
          %v654 = vld [vmem:[#allocation8 + $0x1a4] sm:$0xf]
          %v655 = vld [vmem:[#allocation8 + $0x1a8] sm:$0xf]
          %v656 = vld [vmem:[#allocation8 + $0x1ac] sm:$0xf]
          %v657 = vld [vmem:[#allocation8 + $0x1b0] sm:$0xf]
          %v658 = vld [vmem:[#allocation8 + $0x1b4] sm:$0xf]
          %v659 = vld [vmem:[#allocation8 + $0x1b8] sm:$0xf]
          %v660 = vld [vmem:[#allocation8 + $0x1bc] sm:$0xf]
          %v661 = vld [vmem:[#allocation8 + $0x1c0] sm:$0xf]
          %v662 = vld [vmem:[#allocation8 + $0x1c4] sm:$0xf]
          %v663 = vld [vmem:[#allocation8 + $0x1c8] sm:$0xf]
          %v664 = vld [vmem:[#allocation8 + $0x1cc] sm:$0xf]
          %v665 = vld [vmem:[#allocation8 + $0x1d0] sm:$0xf]
          %v666 = vld [vmem:[#allocation8 + $0x1d4] sm:$0xf]
          %v667 = vld [vmem:[#allocation8 + $0x1d8] sm:$0xf]
          %v668 = vld [vmem:[#allocation8 + $0x1dc] sm:$0xf]
          %v669 = vld [vmem:[#allocation8 + $0x1e0] sm:$0xf]
          %v670 = vld [vmem:[#allocation8 + $0x1e4] sm:$0xf]
          %v671 = vld [vmem:[#allocation8 + $0x1e8] sm:$0xf]
          %v672 = vld [vmem:[#allocation8 + $0x1ec] sm:$0xf]
          %v673 = vld [vmem:[#allocation8 + $0x1f0] sm:$0xf]
          %v674 = vld [vmem:[#allocation8 + $0x1f4] sm:$0xf]
          %v675 = vld [vmem:[#allocation8 + $0x1f8] sm:$0xf]
          %v676 = vld [vmem:[#allocation8 + $0x1fc] sm:$0xf]
          %v677 = vld [vmem:[%s3] sm:$0x1]
          %v679 = vlaneseq
          %v680 = vshrl.u32 %v679, 7
          %v681 = vsub.s32 0, %v680
          %v682 = vrot.slane %v677, %v681
          %v812 = vunpack.c.l.b16 %v549
          %v813 = vunpack.c.l.b16 %v550
          %v814 = vunpack.c.l.b16 %v551
          %v815 = vunpack.c.l.b16 %v552
          %v816 = vunpack.c.l.b16 %v553
          %v817 = vunpack.c.l.b16 %v554
          %v818 = vunpack.c.l.b16 %v555
          %v819 = vunpack.c.l.b16 %v556
          %v820 = vunpack.c.l.b16 %v557
          %v821 = vunpack.c.l.b16 %v558
          %v822 = vunpack.c.l.b16 %v559
          %v823 = vunpack.c.l.b16 %v560
          %v824 = vunpack.c.l.b16 %v561
          %v825 = vunpack.c.l.b16 %v562
          %v826 = vunpack.c.l.b16 %v563
          %v827 = vunpack.c.l.b16 %v564
          %v828 = vunpack.c.l.b16 %v565
          %v829 = vunpack.c.l.b16 %v566
          %v830 = vunpack.c.l.b16 %v567
          %v831 = vunpack.c.l.b16 %v568
          %v832 = vunpack.c.l.b16 %v569
          %v833 = vunpack.c.l.b16 %v570
          %v834 = vunpack.c.l.b16 %v571
          %v835 = vunpack.c.l.b16 %v572
          %v836 = vunpack.c.l.b16 %v573
          %v837 = vunpack.c.l.b16 %v574
          %v838 = vunpack.c.l.b16 %v575
          %v839 = vunpack.c.l.b16 %v576
          %v840 = vunpack.c.l.b16 %v577
          %v841 = vunpack.c.l.b16 %v578
          %v842 = vunpack.c.l.b16 %v579
          %v843 = vunpack.c.l.b16 %v580
          %v844 = vunpack.c.l.b16 %v581
          %v845 = vunpack.c.l.b16 %v582
          %v846 = vunpack.c.l.b16 %v583
          %v847 = vunpack.c.l.b16 %v584
          %v848 = vunpack.c.l.b16 %v585
          %v849 = vunpack.c.l.b16 %v586
          %v850 = vunpack.c.l.b16 %v587
          %v851 = vunpack.c.l.b16 %v588
          %v852 = vunpack.c.l.b16 %v589
          %v853 = vunpack.c.l.b16 %v590
          %v854 = vunpack.c.l.b16 %v591
          %v855 = vunpack.c.l.b16 %v592
          %v856 = vunpack.c.l.b16 %v593
          %v857 = vunpack.c.l.b16 %v594
          %v858 = vunpack.c.l.b16 %v595
          %v859 = vunpack.c.l.b16 %v596
          %v860 = vunpack.c.l.b16 %v597
          %v861 = vunpack.c.l.b16 %v598
          %v862 = vunpack.c.l.b16 %v599
          %v863 = vunpack.c.l.b16 %v600
          %v864 = vunpack.c.l.b16 %v601
          %v865 = vunpack.c.l.b16 %v602
          %v866 = vunpack.c.l.b16 %v603
          %v867 = vunpack.c.l.b16 %v604
          %v868 = vunpack.c.l.b16 %v605
          %v869 = vunpack.c.l.b16 %v606
          %v870 = vunpack.c.l.b16 %v607
          %v871 = vunpack.c.l.b16 %v608
          %v872 = vunpack.c.l.b16 %v609
          %v873 = vunpack.c.l.b16 %v610
          %v874 = vunpack.c.l.b16 %v611
          %v875 = vunpack.c.l.b16 %v612
          %v876 = vunpack.c.l.b16 %v613
          %v877 = vunpack.c.l.b16 %v614
          %v878 = vunpack.c.l.b16 %v615
          %v879 = vunpack.c.l.b16 %v616
          %v880 = vunpack.c.l.b16 %v617
          %v881 = vunpack.c.l.b16 %v618
          %v882 = vunpack.c.l.b16 %v619
          %v883 = vunpack.c.l.b16 %v620
          %v884 = vunpack.c.l.b16 %v621
          %v885 = vunpack.c.l.b16 %v622
          %v886 = vunpack.c.l.b16 %v623
          %v887 = vunpack.c.l.b16 %v624
          %v888 = vunpack.c.l.b16 %v625
          %v889 = vunpack.c.l.b16 %v626
          %v890 = vunpack.c.l.b16 %v627
          %v891 = vunpack.c.l.b16 %v628
          %v892 = vunpack.c.l.b16 %v629
          %v893 = vunpack.c.l.b16 %v630
          %v894 = vunpack.c.l.b16 %v631
          %v895 = vunpack.c.l.b16 %v632
          %v896 = vunpack.c.l.b16 %v633
          %v897 = vunpack.c.l.b16 %v634
          %v898 = vunpack.c.l.b16 %v635
          %v899 = vunpack.c.l.b16 %v636
          %v900 = vunpack.c.l.b16 %v637
          %v901 = vunpack.c.l.b16 %v638
          %v902 = vunpack.c.l.b16 %v639
          %v903 = vunpack.c.l.b16 %v640
          %v904 = vunpack.c.l.b16 %v641
          %v905 = vunpack.c.l.b16 %v642
          %v906 = vunpack.c.l.b16 %v643
          %v907 = vunpack.c.l.b16 %v644
          %v908 = vunpack.c.l.b16 %v645
          %v909 = vunpack.c.l.b16 %v646
          %v910 = vunpack.c.l.b16 %v647
          %v911 = vunpack.c.l.b16 %v648
          %v912 = vunpack.c.l.b16 %v649
          %v913 = vunpack.c.l.b16 %v650
          %v914 = vunpack.c.l.b16 %v651
          %v915 = vunpack.c.l.b16 %v652
          %v916 = vunpack.c.l.b16 %v653
          %v917 = vunpack.c.l.b16 %v654
          %v918 = vunpack.c.l.b16 %v655
          %v919 = vunpack.c.l.b16 %v656
          %v920 = vunpack.c.l.b16 %v657
          %v921 = vunpack.c.l.b16 %v658
          %v922 = vunpack.c.l.b16 %v659
          %v923 = vunpack.c.l.b16 %v660
          %v924 = vunpack.c.l.b16 %v661
          %v925 = vunpack.c.l.b16 %v662
          %v926 = vunpack.c.l.b16 %v663
          %v927 = vunpack.c.l.b16 %v664
          %v928 = vunpack.c.l.b16 %v665
          %v929 = vunpack.c.l.b16 %v666
          %v930 = vunpack.c.l.b16 %v667
          %v931 = vunpack.c.l.b16 %v668
          %v932 = vunpack.c.l.b16 %v669
          %v933 = vunpack.c.l.b16 %v670
          %v934 = vunpack.c.l.b16 %v671
          %v935 = vunpack.c.l.b16 %v672
          %v936 = vunpack.c.l.b16 %v673
          %v937 = vunpack.c.l.b16 %v674
          %v938 = vunpack.c.l.b16 %v675
          %v939 = vunpack.c.l.b16 %v676
          %v940 = vpack.c.b16 %v813, %v812
          %v941 = vpack.c.b16 %v815, %v814
          %v942 = vpack.c.b16 %v817, %v816
          %v943 = vpack.c.b16 %v819, %v818
          %v944 = vpack.c.b16 %v821, %v820
          %v945 = vpack.c.b16 %v823, %v822
          %v946 = vpack.c.b16 %v825, %v824
          %v947 = vpack.c.b16 %v827, %v826
          %v948 = vpack.c.b16 %v829, %v828
          %v949 = vpack.c.b16 %v831, %v830
          %v950 = vpack.c.b16 %v833, %v832
          %v951 = vpack.c.b16 %v835, %v834
          %v952 = vpack.c.b16 %v837, %v836
          %v953 = vpack.c.b16 %v839, %v838
          %v954 = vpack.c.b16 %v841, %v840
          %v955 = vpack.c.b16 %v843, %v842
          %v956 = vpack.c.b16 %v845, %v844
          %v957 = vpack.c.b16 %v847, %v846
          %v958 = vpack.c.b16 %v849, %v848
          %v959 = vpack.c.b16 %v851, %v850
          %v960 = vpack.c.b16 %v853, %v852
          %v961 = vpack.c.b16 %v855, %v854
          %v962 = vpack.c.b16 %v857, %v856
          %v963 = vpack.c.b16 %v859, %v858
          %v964 = vpack.c.b16 %v861, %v860
          %v965 = vpack.c.b16 %v863, %v862
          %v966 = vpack.c.b16 %v865, %v864
          %v967 = vpack.c.b16 %v867, %v866
          %v968 = vpack.c.b16 %v869, %v868
          %v969 = vpack.c.b16 %v871, %v870
          %v970 = vpack.c.b16 %v873, %v872
          %v971 = vpack.c.b16 %v875, %v874
          %v972 = vpack.c.b16 %v877, %v876
          %v973 = vpack.c.b16 %v879, %v878
          %v974 = vpack.c.b16 %v881, %v880
          %v975 = vpack.c.b16 %v883, %v882
          %v976 = vpack.c.b16 %v885, %v884
          %v977 = vpack.c.b16 %v887, %v886
          %v978 = vpack.c.b16 %v889, %v888
          %v979 = vpack.c.b16 %v891, %v890
          %v980 = vpack.c.b16 %v893, %v892
          %v981 = vpack.c.b16 %v895, %v894
          %v982 = vpack.c.b16 %v897, %v896
          %v983 = vpack.c.b16 %v899, %v898
          %v984 = vpack.c.b16 %v901, %v900
          %v985 = vpack.c.b16 %v903, %v902
          %v986 = vpack.c.b16 %v905, %v904
          %v987 = vpack.c.b16 %v907, %v906
          %v988 = vpack.c.b16 %v909, %v908
          %v989 = vpack.c.b16 %v911, %v910
          %v990 = vpack.c.b16 %v913, %v912
          %v991 = vpack.c.b16 %v915, %v914
          %v992 = vpack.c.b16 %v917, %v916
          %v993 = vpack.c.b16 %v919, %v918
          %v994 = vpack.c.b16 %v921, %v920
          %v995 = vpack.c.b16 %v923, %v922
          %v996 = vpack.c.b16 %v925, %v924
          %v997 = vpack.c.b16 %v927, %v926
          %v998 = vpack.c.b16 %v929, %v928
          %v999 = vpack.c.b16 %v931, %v930
          %v1000 = vpack.c.b16 %v933, %v932
          %v1001 = vpack.c.b16 %v935, %v934
          %v1002 = vpack.c.b16 %v937, %v936
          %v1003 = vpack.c.b16 %v939, %v938
          %1068 = vmatprep.subr.bf16.mxu0 0
          %1069 = vmatpush1.bf16.msra.mxu0 %v940
          %1070 = vmatprep.subr.bf16.mxu0 0
          %1071 = vmatpush1.bf16.msra.mxu0 %v941
          %1072 = vmatprep.subr.bf16.mxu0 0
          %1073 = vmatpush1.bf16.msra.mxu0 %v942
          %1074 = vmatprep.subr.bf16.mxu0 0
          %1075 = vmatpush1.bf16.msra.mxu0 %v943
          %1076 = vmatprep.subr.bf16.mxu0 0
          %1077 = vmatpush1.bf16.msra.mxu0 %v944
          %1078 = vmatprep.subr.bf16.mxu0 0
          %1079 = vmatpush1.bf16.msra.mxu0 %v945
          %1080 = vmatprep.subr.bf16.mxu0 0
          %1081 = vmatpush1.bf16.msra.mxu0 %v946
          %1082 = vmatprep.subr.bf16.mxu0 0
          %1083 = vmatpush1.bf16.msra.mxu0 %v947
          %1084 = vmatprep.subr.bf16.mxu0 0
          %1085 = vmatpush1.bf16.msra.mxu0 %v948
          %1086 = vmatprep.subr.bf16.mxu0 0
          %1087 = vmatpush1.bf16.msra.mxu0 %v949
          %1088 = vmatprep.subr.bf16.mxu0 0
          %1089 = vmatpush1.bf16.msra.mxu0 %v950
          %1090 = vmatprep.subr.bf16.mxu0 0
          %1091 = vmatpush1.bf16.msra.mxu0 %v951
          %1092 = vmatprep.subr.bf16.mxu0 0
          %1093 = vmatpush1.bf16.msra.mxu0 %v952
          %1094 = vmatprep.subr.bf16.mxu0 0
          %1095 = vmatpush1.bf16.msra.mxu0 %v953
          %1096 = vmatprep.subr.bf16.mxu0 0
          %1097 = vmatpush1.bf16.msra.mxu0 %v954
          %1098 = vmatprep.subr.bf16.mxu0 0
          %1099 = vmatpush1.bf16.msra.mxu0 %v955
          %1100 = vmatprep.mubr.bf16.mxu0 %v542
          %1101 = vmatmul.mubr.bf16.gmra.mrb[0].mxu0 %v541
          %v1102 = vpop.f32.mrb[0].mxu0
          %v1103 = vadd.f32 %v682, %v1102
          %v1104 = vpop.f32.mrb[0].mxu0
          %v1105 = vpop.f32.mrb[0].mxu0
          %v1106 = vpop.f32.mrb[0].mxu0
          %1107 = vdwg.mxu0
          %1108 = vmatprep.subr.bf16.mxu0 0
          %1109 = vmatpush1.bf16.msra.mxu0 %v956
          %1110 = vmatprep.subr.bf16.mxu0 0
          %1111 = vmatpush1.bf16.msra.mxu0 %v957
          %1112 = vmatprep.subr.bf16.mxu0 0
          %1113 = vmatpush1.bf16.msra.mxu0 %v958
          %1114 = vmatprep.subr.bf16.mxu0 0
          %1115 = vmatpush1.bf16.msra.mxu0 %v959
          %1116 = vmatprep.subr.bf16.mxu0 0
          %1117 = vmatpush1.bf16.msra.mxu0 %v960
          %1118 = vmatprep.subr.bf16.mxu0 0
          %1119 = vmatpush1.bf16.msra.mxu0 %v961
          %1120 = vmatprep.subr.bf16.mxu0 0
          %1121 = vmatpush1.bf16.msra.mxu0 %v962
          %1122 = vmatprep.subr.bf16.mxu0 0
          %1123 = vmatpush1.bf16.msra.mxu0 %v963
          %1124 = vmatprep.subr.bf16.mxu0 0
          %1125 = vmatpush1.bf16.msra.mxu0 %v964
          %1126 = vmatprep.subr.bf16.mxu0 0
          %1127 = vmatpush1.bf16.msra.mxu0 %v965
          %1128 = vmatprep.subr.bf16.mxu0 0
          %1129 = vmatpush1.bf16.msra.mxu0 %v966
          %1130 = vmatprep.subr.bf16.mxu0 0
          %1131 = vmatpush1.bf16.msra.mxu0 %v967
          %1132 = vmatprep.subr.bf16.mxu0 0
          %1133 = vmatpush1.bf16.msra.mxu0 %v968
          %1134 = vmatprep.subr.bf16.mxu0 0
          %1135 = vmatpush1.bf16.msra.mxu0 %v969
          %1136 = vmatprep.subr.bf16.mxu0 0
          %1137 = vmatpush1.bf16.msra.mxu0 %v970
          %1138 = vmatprep.subr.bf16.mxu0 0
          %1139 = vmatpush1.bf16.msra.mxu0 %v971
          %1140 = vmatprep.mubr.bf16.mxu0 %v544
          %1141 = vmatmul.mubr.bf16.gmra.mrb[0].mxu0 %v543
          %v1142 = vpop.f32.mrb[0].mxu0
          %v1143 = vadd.f32 %v1103, %v1142
          %v1144 = vpop.f32.mrb[0].mxu0
          %v1145 = vpop.f32.mrb[0].mxu0
          %v1146 = vpop.f32.mrb[0].mxu0
          %1147 = vdwg.mxu0
          %1148 = vmatprep.subr.bf16.mxu0 0
          %1149 = vmatpush1.bf16.msra.mxu0 %v972
          %1150 = vmatprep.subr.bf16.mxu0 0
          %1151 = vmatpush1.bf16.msra.mxu0 %v973
          %1152 = vmatprep.subr.bf16.mxu0 0
          %1153 = vmatpush1.bf16.msra.mxu0 %v974
          %1154 = vmatprep.subr.bf16.mxu0 0
          %1155 = vmatpush1.bf16.msra.mxu0 %v975
          %1156 = vmatprep.subr.bf16.mxu0 0
          %1157 = vmatpush1.bf16.msra.mxu0 %v976
          %1158 = vmatprep.subr.bf16.mxu0 0
          %1159 = vmatpush1.bf16.msra.mxu0 %v977
          %1160 = vmatprep.subr.bf16.mxu0 0
          %1161 = vmatpush1.bf16.msra.mxu0 %v978
          %1162 = vmatprep.subr.bf16.mxu0 0
          %1163 = vmatpush1.bf16.msra.mxu0 %v979
          %1164 = vmatprep.subr.bf16.mxu0 0
          %1165 = vmatpush1.bf16.msra.mxu0 %v980
          %1166 = vmatprep.subr.bf16.mxu0 0
          %1167 = vmatpush1.bf16.msra.mxu0 %v981
          %1168 = vmatprep.subr.bf16.mxu0 0
          %1169 = vmatpush1.bf16.msra.mxu0 %v982
          %1170 = vmatprep.subr.bf16.mxu0 0
          %1171 = vmatpush1.bf16.msra.mxu0 %v983
          %1172 = vmatprep.subr.bf16.mxu0 0
          %1173 = vmatpush1.bf16.msra.mxu0 %v984
          %1174 = vmatprep.subr.bf16.mxu0 0
          %1175 = vmatpush1.bf16.msra.mxu0 %v985
          %1176 = vmatprep.subr.bf16.mxu0 0
          %1177 = vmatpush1.bf16.msra.mxu0 %v986
          %1178 = vmatprep.subr.bf16.mxu0 0
          %1179 = vmatpush1.bf16.msra.mxu0 %v987
          %1180 = vmatprep.mubr.bf16.mxu0 %v546
          %1181 = vmatmul.mubr.bf16.gmra.mrb[0].mxu0 %v545
          %v1182 = vpop.f32.mrb[0].mxu0
          %v1183 = vadd.f32 %v1143, %v1182
          %v1184 = vpop.f32.mrb[0].mxu0
          %v1185 = vpop.f32.mrb[0].mxu0
          %v1186 = vpop.f32.mrb[0].mxu0
          %1187 = vdwg.mxu0
          %1188 = vmatprep.subr.bf16.mxu0 0
          %1189 = vmatpush1.bf16.msra.mxu0 %v988
          %1190 = vmatprep.subr.bf16.mxu0 0
          %1191 = vmatpush1.bf16.msra.mxu0 %v989
          %1192 = vmatprep.subr.bf16.mxu0 0
          %1193 = vmatpush1.bf16.msra.mxu0 %v990
          %1194 = vmatprep.subr.bf16.mxu0 0
          %1195 = vmatpush1.bf16.msra.mxu0 %v991
          %1196 = vmatprep.subr.bf16.mxu0 0
          %1197 = vmatpush1.bf16.msra.mxu0 %v992
          %1198 = vmatprep.subr.bf16.mxu0 0
          %1199 = vmatpush1.bf16.msra.mxu0 %v993
          %1200 = vmatprep.subr.bf16.mxu0 0
          %1201 = vmatpush1.bf16.msra.mxu0 %v994
          %1202 = vmatprep.subr.bf16.mxu0 0
          %1203 = vmatpush1.bf16.msra.mxu0 %v995
          %1204 = vmatprep.subr.bf16.mxu0 0
          %1205 = vmatpush1.bf16.msra.mxu0 %v996
          %1206 = vmatprep.subr.bf16.mxu0 0
          %1207 = vmatpush1.bf16.msra.mxu0 %v997
          %1208 = vmatprep.subr.bf16.mxu0 0
          %1209 = vmatpush1.bf16.msra.mxu0 %v998
          %1210 = vmatprep.subr.bf16.mxu0 0
          %1211 = vmatpush1.bf16.msra.mxu0 %v999
          %1212 = vmatprep.subr.bf16.mxu0 0
          %1213 = vmatpush1.bf16.msra.mxu0 %v1000
          %1214 = vmatprep.subr.bf16.mxu0 0
          %1215 = vmatpush1.bf16.msra.mxu0 %v1001
          %1216 = vmatprep.subr.bf16.mxu0 0
          %1217 = vmatpush1.bf16.msra.mxu0 %v1002
          %1218 = vmatprep.subr.bf16.mxu0 0
          %1219 = vmatpush1.bf16.msra.mxu0 %v1003
          %1220 = vmatprep.mubr.bf16.mxu0 %v548
          %1221 = vmatmul.mubr.bf16.gmra.mrb[0].mxu0 %v547
          %v1222 = vpop.f32.mrb[0].mxu0
          %v1223 = vadd.f32 %v1183, %v1222
          %v1224 = vpop.f32.mrb[0].mxu0
          %v1225 = vpop.f32.mrb[0].mxu0
          %v1226 = vpop.f32.mrb[0].mxu0
          %1227 = vdwg.mxu0
          %v1228 = vmax.f32 %v1223, 0.0
          %v1229 = vpack.c.bf16 %v1228, %v1228
          %v1230 = vld [vmem:[#allocation9] sm:$0xff]
          %v1231 = vld [vmem:[#allocation9 + $0x8] sm:$0xff]
          %v1232 = vld [vmem:[#allocation9 + $0x10] sm:$0xff]
          %v1233 = vld [vmem:[#allocation9 + $0x18] sm:$0xff]
          %v1234 = vld [vmem:[#allocation9 + $0x20] sm:$0xff]
          %v1235 = vld [vmem:[#allocation9 + $0x28] sm:$0xff]
          %v1236 = vld [vmem:[#allocation9 + $0x30] sm:$0xff]
          %v1237 = vld [vmem:[#allocation9 + $0x38] sm:$0xff]
          %v1238 = vld [vmem:[#allocation9 + $0x40] sm:$0xff]
          %v1239 = vld [vmem:[#allocation9 + $0x48] sm:$0xff]
          %v1240 = vld [vmem:[#allocation9 + $0x50] sm:$0xff]
          %v1241 = vld [vmem:[#allocation9 + $0x58] sm:$0xff]
          %v1242 = vld [vmem:[#allocation9 + $0x60] sm:$0xff]
          %v1243 = vld [vmem:[#allocation9 + $0x68] sm:$0xff]
          %v1244 = vld [vmem:[#allocation9 + $0x70] sm:$0xff]
          %v1245 = vld [vmem:[#allocation9 + $0x78] sm:$0xff]
          %v1246 = vld [vmem:[%s5] sm:$0x3]
          %v1248 = vlaneseq
          %v1249 = vshrl.u32 %v1248, 7
          %v1250 = vsub.s32 0, %v1249
          %v1251 = vrot.slane %v1246, %v1250
          %v1252 = vlaneseq
          %v1253 = vshrl.u32 %v1252, 7
          %v1254 = vsub.s32 1, %v1253
          %v1255 = vrot.slane %v1246, %v1254
          %v1274 = vunpack.c.l.b16 %v1230
          %v1275 = vunpack.c.h.b16 %v1230
          %v1276 = vunpack.c.l.b16 %v1231
          %v1277 = vunpack.c.h.b16 %v1231
          %v1278 = vunpack.c.l.b16 %v1232
          %v1279 = vunpack.c.h.b16 %v1232
          %v1280 = vunpack.c.l.b16 %v1233
          %v1281 = vunpack.c.h.b16 %v1233
          %v1282 = vunpack.c.l.b16 %v1234
          %v1283 = vunpack.c.h.b16 %v1234
          %v1284 = vunpack.c.l.b16 %v1235
          %v1285 = vunpack.c.h.b16 %v1235
          %v1286 = vunpack.c.l.b16 %v1236
          %v1287 = vunpack.c.h.b16 %v1236
          %v1288 = vunpack.c.l.b16 %v1237
          %v1289 = vunpack.c.h.b16 %v1237
          %v1290 = vunpack.c.l.b16 %v1238
          %v1291 = vunpack.c.h.b16 %v1238
          %v1292 = vunpack.c.l.b16 %v1239
          %v1293 = vunpack.c.h.b16 %v1239
          %v1294 = vunpack.c.l.b16 %v1240
          %v1295 = vunpack.c.h.b16 %v1240
          %v1296 = vunpack.c.l.b16 %v1241
          %v1297 = vunpack.c.h.b16 %v1241
          %v1298 = vunpack.c.l.b16 %v1242
          %v1299 = vunpack.c.h.b16 %v1242
          %v1300 = vunpack.c.l.b16 %v1243
          %v1301 = vunpack.c.h.b16 %v1243
          %v1302 = vunpack.c.l.b16 %v1244
          %v1303 = vunpack.c.h.b16 %v1244
          %v1304 = vunpack.c.l.b16 %v1245
          %v1305 = vunpack.c.h.b16 %v1245
          %v1306 = vpack.c.b16 %v1276, %v1274
          %v1307 = vpack.c.b16 %v1277, %v1275
          %v1308 = vpack.c.b16 %v1280, %v1278
          %v1309 = vpack.c.b16 %v1281, %v1279
          %v1310 = vpack.c.b16 %v1284, %v1282
          %v1311 = vpack.c.b16 %v1285, %v1283
          %v1312 = vpack.c.b16 %v1288, %v1286
          %v1313 = vpack.c.b16 %v1289, %v1287
          %v1314 = vpack.c.b16 %v1292, %v1290
          %v1315 = vpack.c.b16 %v1293, %v1291
          %v1316 = vpack.c.b16 %v1296, %v1294
          %v1317 = vpack.c.b16 %v1297, %v1295
          %v1318 = vpack.c.b16 %v1300, %v1298
          %v1319 = vpack.c.b16 %v1301, %v1299
          %v1320 = vpack.c.b16 %v1304, %v1302
          %v1321 = vpack.c.b16 %v1305, %v1303
          %1338 = vmatprep.subr.bf16.mxu0 %v1307
          %1339 = vmatpush1.bf16.msra.mxu0 %v1306
          %1340 = vmatprep.subr.bf16.mxu0 %v1309
          %1341 = vmatpush1.bf16.msra.mxu0 %v1308
          %1342 = vmatprep.subr.bf16.mxu0 %v1311
          %1343 = vmatpush1.bf16.msra.mxu0 %v1310
          %1344 = vmatprep.subr.bf16.mxu0 %v1313
          %1345 = vmatpush1.bf16.msra.mxu0 %v1312
          %1346 = vmatprep.subr.bf16.mxu0 %v1315
          %1347 = vmatpush1.bf16.msra.mxu0 %v1314
          %1348 = vmatprep.subr.bf16.mxu0 %v1317
          %1349 = vmatpush1.bf16.msra.mxu0 %v1316
          %1350 = vmatprep.subr.bf16.mxu0 %v1319
          %1351 = vmatpush1.bf16.msra.mxu0 %v1318
          %1352 = vmatprep.subr.bf16.mxu0 %v1321
          %1353 = vmatpush1.bf16.msra.mxu0 %v1320
          %1354 = vmatprep.subr.bf16.mxu0 0
          %1355 = vmatpush1.bf16.msra.mxu0 0
          %1356 = vmatprep.subr.bf16.mxu0 0
          %1357 = vmatpush1.bf16.msra.mxu0 0
          %1358 = vmatprep.subr.bf16.mxu0 0
          %1359 = vmatpush1.bf16.msra.mxu0 0
          %1360 = vmatprep.subr.bf16.mxu0 0
          %1361 = vmatpush1.bf16.msra.mxu0 0
          %1362 = vmatprep.subr.bf16.mxu0 0
          %1363 = vmatpush1.bf16.msra.mxu0 0
          %1364 = vmatprep.subr.bf16.mxu0 0
          %1365 = vmatpush1.bf16.msra.mxu0 0
          %1366 = vmatprep.subr.bf16.mxu0 0
          %1367 = vmatpush1.bf16.msra.mxu0 0
          %1368 = vmatprep.subr.bf16.mxu0 0
          %1369 = vmatpush1.bf16.msra.mxu0 0
          %1370 = vmatprep.mubr.bf16.mxu0 0
          %1371 = vmatmul.mubr.bf16.gmra.mrb[0].mxu0 %v1229
          %v1372 = vpop.f32.mrb[0].mxu0
          %v1373 = vadd.f32 %v1251, %v1372
          %v1374 = vpop.f32.mrb[0].mxu0
          %v1375 = vadd.f32 %v1255, %v1374
          %v1376 = vpop.f32.mrb[0].mxu0
          %v1377 = vpop.f32.mrb[0].mxu0
          %1378 = vdwg.mxu0
          %1379 = vst [vmem:[#allocation15] sm:$0xff] %v1373
          %1380 = vst [vmem:[#allocation15 + $0x8] sm:$0xff] %v1375
          %v1381 = vld [vmem:[#allocation6] sm:$0xff]
          %v1382 = vmul.f32 %v1375, 0.5
          %v1383 = vmul.f32 %v1382, 1.442695
          %v1384 = vpow.pop %v1383
          %v1385 = vmul.f32 %v1381, %v1384
          %v1386 = vadd.f32 %v1373, %v1385
          %v1387 = vpack.c.bf16 %v1386, %v1386
          %v1388 = vld [vmem:[#allocation11] sm:$0xf]
          %v1389 = vld [vmem:[#allocation11 + $0x4] sm:$0xf]
          %v1390 = vld [vmem:[#allocation11 + $0x8] sm:$0xf]
          %v1391 = vld [vmem:[#allocation11 + $0xc] sm:$0xf]
          %v1392 = vld [vmem:[#allocation11 + $0x10] sm:$0xf]
          %v1393 = vld [vmem:[#allocation11 + $0x14] sm:$0xf]
          %v1394 = vld [vmem:[#allocation11 + $0x18] sm:$0xf]
          %v1395 = vld [vmem:[#allocation11 + $0x1c] sm:$0xf]
          %v1396 = vld [vmem:[#allocation11 + $0x20] sm:$0xf]
          %v1397 = vld [vmem:[#allocation11 + $0x24] sm:$0xf]
          %v1398 = vld [vmem:[#allocation11 + $0x28] sm:$0xf]
          %v1399 = vld [vmem:[#allocation11 + $0x2c] sm:$0xf]
          %v1400 = vld [vmem:[#allocation11 + $0x30] sm:$0xf]
          %v1401 = vld [vmem:[#allocation11 + $0x34] sm:$0xf]
          %v1402 = vld [vmem:[#allocation11 + $0x38] sm:$0xf]
          %v1403 = vld [vmem:[#allocation11 + $0x3c] sm:$0xf]
          %v1404 = vld [vmem:[%s7] sm:$0x1]
          %v1406 = vlaneseq
          %v1407 = vshrl.u32 %v1406, 7
          %v1408 = vsub.s32 0, %v1407
          %v1409 = vrot.slane %v1404, %v1408
          %v1427 = vunpack.c.l.b16 %v1388
          %v1428 = vunpack.c.l.b16 %v1389
          %v1429 = vunpack.c.l.b16 %v1390
          %v1430 = vunpack.c.l.b16 %v1391
          %v1431 = vunpack.c.l.b16 %v1392
          %v1432 = vunpack.c.l.b16 %v1393
          %v1433 = vunpack.c.l.b16 %v1394
          %v1434 = vunpack.c.l.b16 %v1395
          %v1435 = vunpack.c.l.b16 %v1396
          %v1436 = vunpack.c.l.b16 %v1397
          %v1437 = vunpack.c.l.b16 %v1398
          %v1438 = vunpack.c.l.b16 %v1399
          %v1439 = vunpack.c.l.b16 %v1400
          %v1440 = vunpack.c.l.b16 %v1401
          %v1441 = vunpack.c.l.b16 %v1402
          %v1442 = vunpack.c.l.b16 %v1403
          %v1443 = vpack.c.b16 %v1428, %v1427
          %v1444 = vpack.c.b16 %v1430, %v1429
          %v1445 = vpack.c.b16 %v1432, %v1431
          %v1446 = vpack.c.b16 %v1434, %v1433
          %v1447 = vpack.c.b16 %v1436, %v1435
          %v1448 = vpack.c.b16 %v1438, %v1437
          %v1449 = vpack.c.b16 %v1440, %v1439
          %v1450 = vpack.c.b16 %v1442, %v1441
          %1459 = vmatprep.subr.bf16.mxu0 0
          %1460 = vmatpush1.bf16.msra.mxu0 %v1443
          %1461 = vmatprep.subr.bf16.mxu0 0
          %1462 = vmatpush1.bf16.msra.mxu0 %v1444
          %1463 = vmatprep.subr.bf16.mxu0 0
          %1464 = vmatpush1.bf16.msra.mxu0 %v1445
          %1465 = vmatprep.subr.bf16.mxu0 0
          %1466 = vmatpush1.bf16.msra.mxu0 %v1446
          %1467 = vmatprep.subr.bf16.mxu0 0
          %1468 = vmatpush1.bf16.msra.mxu0 %v1447
          %1469 = vmatprep.subr.bf16.mxu0 0
          %1470 = vmatpush1.bf16.msra.mxu0 %v1448
          %1471 = vmatprep.subr.bf16.mxu0 0
          %1472 = vmatpush1.bf16.msra.mxu0 %v1449
          %1473 = vmatprep.subr.bf16.mxu0 0
          %1474 = vmatpush1.bf16.msra.mxu0 %v1450
          %1475 = vmatprep.subr.bf16.mxu0 0
          %1476 = vmatpush1.bf16.msra.mxu0 0
          %1477 = vmatprep.subr.bf16.mxu0 0
          %1478 = vmatpush1.bf16.msra.mxu0 0
          %1479 = vmatprep.subr.bf16.mxu0 0
          %1480 = vmatpush1.bf16.msra.mxu0 0
          %1481 = vmatprep.subr.bf16.mxu0 0
          %1482 = vmatpush1.bf16.msra.mxu0 0
          %1483 = vmatprep.subr.bf16.mxu0 0
          %1484 = vmatpush1.bf16.msra.mxu0 0
          %1485 = vmatprep.subr.bf16.mxu0 0
          %1486 = vmatpush1.bf16.msra.mxu0 0
          %1487 = vmatprep.subr.bf16.mxu0 0
          %1488 = vmatpush1.bf16.msra.mxu0 0
          %1489 = vmatprep.subr.bf16.mxu0 0
          %1490 = vmatpush1.bf16.msra.mxu0 0
          %1491 = vmatprep.mubr.bf16.mxu0 0
          %1492 = vmatmul.mubr.bf16.gmra.mrb[0].mxu0 %v1387
          %v1493 = vpop.f32.mrb[0].mxu0
          %v1494 = vadd.f32 %v1409, %v1493
          %v1495 = vpop.f32.mrb[0].mxu0
          %v1496 = vpop.f32.mrb[0].mxu0
          %v1497 = vpop.f32.mrb[0].mxu0
          %1498 = vdwg.mxu0
          %v1499 = vmax.f32 %v1494, 0.0
          %1500 = vst [vmem:[#allocation2] sm:$0xff] %v1499
        $region88: #{tpu_custom_call.1} parent=59 // pred_fallthru
          _
        %v1501 = vld [vmem:[#allocation2] sm:$0xff]
        %v1502 = vpack.c.bf16 %v1501, %v1501
        %v1503 = vld [vmem:[%s478] sm:$0xff]
        %v1504 = vld [vmem:[%s478 + $0x8] sm:$0xff]
        %v1505 = vld [vmem:[%s478 + $0x10] sm:$0xff]
        %v1506 = vld [vmem:[%s478 + $0x18] sm:$0xff]
        %v1507 = vld [vmem:[%s478 + $0x20] sm:$0xff]
        %v1508 = vld [vmem:[%s478 + $0x28] sm:$0xff]
        %v1509 = vld [vmem:[%s478 + $0x30] sm:$0xff]
        %v1510 = vld [vmem:[%s478 + $0x38] sm:$0xff]
        %v1511 = vld [vmem:[%s478 + $0x40] sm:$0xff]
        %v1512 = vld [vmem:[%s478 + $0x48] sm:$0xff]
        %v1513 = vld [vmem:[%s478 + $0x50] sm:$0xff]
        %v1514 = vld [vmem:[%s478 + $0x58] sm:$0xff]
        %v1515 = vld [vmem:[%s478 + $0x60] sm:$0xff]
        %v1516 = vld [vmem:[%s478 + $0x68] sm:$0xff]
        %v1517 = vld [vmem:[%s478 + $0x70] sm:$0xff]
        %v1518 = vld [vmem:[%s478 + $0x78] sm:$0xff]
        %v1519 = vld [vmem:[%s478 + $0x80] sm:$0xff]
        %v1520 = vld [vmem:[%s478 + $0x88] sm:$0xff]
        %v1521 = vld [vmem:[%s478 + $0x90] sm:$0xff]
        %v1522 = vld [vmem:[%s478 + $0x98] sm:$0xff]
        %v1523 = vld [vmem:[%s478 + $0xa0] sm:$0xff]
        %v1524 = vld [vmem:[%s478 + $0xa8] sm:$0xff]
        %v1525 = vld [vmem:[%s478 + $0xb0] sm:$0xff]
        %v1526 = vld [vmem:[%s478 + $0xb8] sm:$0xff]
        %v1527 = vld [vmem:[%s478 + $0xc0] sm:$0xff]
        %v1528 = vld [vmem:[%s478 + $0xc8] sm:$0xff]
        %v1529 = vld [vmem:[%s478 + $0xd0] sm:$0xff]
        %v1530 = vld [vmem:[%s478 + $0xd8] sm:$0xff]
        %v1531 = vld [vmem:[%s478 + $0xe0] sm:$0xff]
        %v1532 = vld [vmem:[%s478 + $0xe8] sm:$0xff]
        %v1533 = vld [vmem:[%s478 + $0xf0] sm:$0xff]
        %v1534 = vld [vmem:[%s478 + $0xf8] sm:$0xff]
        %v1535 = vld [vmem:[%s525] sm:$0xf]
        %v1537 = vlaneseq
        %v1538 = vshrl.u32 %v1537, 7
        %v1539 = vsub.s32 0, %v1538
        %v1540 = vrot.slane %v1535, %v1539
        %v1541 = vlaneseq
        %v1542 = vshrl.u32 %v1541, 7
        %v1543 = vsub.s32 1, %v1542
        %v1544 = vrot.slane %v1535, %v1543
        %v1545 = vlaneseq
        %v1546 = vshrl.u32 %v1545, 7
        %v1547 = vsub.s32 2, %v1546
        %v1548 = vrot.slane %v1535, %v1547
        %v1549 = vlaneseq
        %v1550 = vshrl.u32 %v1549, 7
        %v1551 = vsub.s32 3, %v1550
        %v1552 = vrot.slane %v1535, %v1551
        %v1589 = vunpack.c.l.b16 %v1503
        %v1590 = vunpack.c.h.b16 %v1503
        %v1591 = vunpack.c.l.b16 %v1504
        %v1592 = vunpack.c.h.b16 %v1504
        %v1593 = vunpack.c.l.b16 %v1505
        %v1594 = vunpack.c.h.b16 %v1505
        %v1595 = vunpack.c.l.b16 %v1506
        %v1596 = vunpack.c.h.b16 %v1506
        %v1597 = vunpack.c.l.b16 %v1507
        %v1598 = vunpack.c.h.b16 %v1507
        %v1599 = vunpack.c.l.b16 %v1508
        %v1600 = vunpack.c.h.b16 %v1508
        %v1601 = vunpack.c.l.b16 %v1509
        %v1602 = vunpack.c.h.b16 %v1509
        %v1603 = vunpack.c.l.b16 %v1510
        %v1604 = vunpack.c.h.b16 %v1510
        %v1605 = vunpack.c.l.b16 %v1511
        %v1606 = vunpack.c.h.b16 %v1511
        %v1607 = vunpack.c.l.b16 %v1512
        %v1608 = vunpack.c.h.b16 %v1512
        %v1609 = vunpack.c.l.b16 %v1513
        %v1610 = vunpack.c.h.b16 %v1513
        %v1611 = vunpack.c.l.b16 %v1514
        %v1612 = vunpack.c.h.b16 %v1514
        %v1613 = vunpack.c.l.b16 %v1515
        %v1614 = vunpack.c.h.b16 %v1515
        %v1615 = vunpack.c.l.b16 %v1516
        %v1616 = vunpack.c.h.b16 %v1516
        %v1617 = vunpack.c.l.b16 %v1517
        %v1618 = vunpack.c.h.b16 %v1517
        %v1619 = vunpack.c.l.b16 %v1518
        %v1620 = vunpack.c.h.b16 %v1518
        %v1621 = vunpack.c.l.b16 %v1519
        %v1622 = vunpack.c.h.b16 %v1519
        %v1623 = vunpack.c.l.b16 %v1520
        %v1624 = vunpack.c.h.b16 %v1520
        %v1625 = vunpack.c.l.b16 %v1521
        %v1626 = vunpack.c.h.b16 %v1521
        %v1627 = vunpack.c.l.b16 %v1522
        %v1628 = vunpack.c.h.b16 %v1522
        %v1629 = vunpack.c.l.b16 %v1523
        %v1630 = vunpack.c.h.b16 %v1523
        %v1631 = vunpack.c.l.b16 %v1524
        %v1632 = vunpack.c.h.b16 %v1524
        %v1633 = vunpack.c.l.b16 %v1525
        %v1634 = vunpack.c.h.b16 %v1525
        %v1635 = vunpack.c.l.b16 %v1526
        %v1636 = vunpack.c.h.b16 %v1526
        %v1637 = vunpack.c.l.b16 %v1527
        %v1638 = vunpack.c.h.b16 %v1527
        %v1639 = vunpack.c.l.b16 %v1528
        %v1640 = vunpack.c.h.b16 %v1528
        %v1641 = vunpack.c.l.b16 %v1529
        %v1642 = vunpack.c.h.b16 %v1529
        %v1643 = vunpack.c.l.b16 %v1530
        %v1644 = vunpack.c.h.b16 %v1530
        %v1645 = vunpack.c.l.b16 %v1531
        %v1646 = vunpack.c.h.b16 %v1531
        %v1647 = vunpack.c.l.b16 %v1532
        %v1648 = vunpack.c.h.b16 %v1532
        %v1649 = vunpack.c.l.b16 %v1533
        %v1650 = vunpack.c.h.b16 %v1533
        %v1651 = vunpack.c.l.b16 %v1534
        %v1652 = vunpack.c.h.b16 %v1534
        %v1653 = vpack.c.b16 %v1593, %v1589
        %v1654 = vpack.c.b16 %v1594, %v1590
        %v1655 = vpack.c.b16 %v1595, %v1591
        %v1656 = vpack.c.b16 %v1596, %v1592
        %v1657 = vpack.c.b16 %v1601, %v1597
        %v1658 = vpack.c.b16 %v1602, %v1598
        %v1659 = vpack.c.b16 %v1603, %v1599
        %v1660 = vpack.c.b16 %v1604, %v1600
        %v1661 = vpack.c.b16 %v1609, %v1605
        %v1662 = vpack.c.b16 %v1610, %v1606
        %v1663 = vpack.c.b16 %v1611, %v1607
        %v1664 = vpack.c.b16 %v1612, %v1608
        %v1665 = vpack.c.b16 %v1617, %v1613
        %v1666 = vpack.c.b16 %v1618, %v1614
        %v1667 = vpack.c.b16 %v1619, %v1615
        %v1668 = vpack.c.b16 %v1620, %v1616
        %v1669 = vpack.c.b16 %v1625, %v1621
        %v1670 = vpack.c.b16 %v1626, %v1622
        %v1671 = vpack.c.b16 %v1627, %v1623
        %v1672 = vpack.c.b16 %v1628, %v1624
        %v1673 = vpack.c.b16 %v1633, %v1629
        %v1674 = vpack.c.b16 %v1634, %v1630
        %v1675 = vpack.c.b16 %v1635, %v1631
        %v1676 = vpack.c.b16 %v1636, %v1632
        %v1677 = vpack.c.b16 %v1641, %v1637
        %v1678 = vpack.c.b16 %v1642, %v1638
        %v1679 = vpack.c.b16 %v1643, %v1639
        %v1680 = vpack.c.b16 %v1644, %v1640
        %v1681 = vpack.c.b16 %v1649, %v1645
        %v1682 = vpack.c.b16 %v1650, %v1646
        %v1683 = vpack.c.b16 %v1651, %v1647
        %v1684 = vpack.c.b16 %v1652, %v1648
        %1717 = vmatprep.subr.bf16.mxu0 %v1654
        %1718 = vmatpush1.bf16.msra.mxu0 %v1653
        %1719 = vmatprep.subr.bf16.mxu0 %v1658
        %1720 = vmatpush1.bf16.msra.mxu0 %v1657
        %1721 = vmatprep.subr.bf16.mxu0 %v1662
        %1722 = vmatpush1.bf16.msra.mxu0 %v1661
        %1723 = vmatprep.subr.bf16.mxu0 %v1666
        %1724 = vmatpush1.bf16.msra.mxu0 %v1665
        %1725 = vmatprep.subr.bf16.mxu0 %v1670
        %1726 = vmatpush1.bf16.msra.mxu0 %v1669
        %1727 = vmatprep.subr.bf16.mxu0 %v1674
        %1728 = vmatpush1.bf16.msra.mxu0 %v1673
        %1729 = vmatprep.subr.bf16.mxu0 %v1678
        %1730 = vmatpush1.bf16.msra.mxu0 %v1677
        %1731 = vmatprep.subr.bf16.mxu0 %v1682
        %1732 = vmatpush1.bf16.msra.mxu0 %v1681
        %1733 = vmatprep.subr.bf16.mxu0 0
        %1734 = vmatpush1.bf16.msra.mxu0 0
        %1735 = vmatprep.subr.bf16.mxu0 0
        %1736 = vmatpush1.bf16.msra.mxu0 0
        %1737 = vmatprep.subr.bf16.mxu0 0
        %1738 = vmatpush1.bf16.msra.mxu0 0
        %1739 = vmatprep.subr.bf16.mxu0 0
        %1740 = vmatpush1.bf16.msra.mxu0 0
        %1741 = vmatprep.subr.bf16.mxu0 0
        %1742 = vmatpush1.bf16.msra.mxu0 0
        %1743 = vmatprep.subr.bf16.mxu0 0
        %1744 = vmatpush1.bf16.msra.mxu0 0
        %1745 = vmatprep.subr.bf16.mxu0 0
        %1746 = vmatpush1.bf16.msra.mxu0 0
        %1747 = vmatprep.subr.bf16.mxu0 0
        %1748 = vmatpush1.bf16.msra.mxu0 0
        %1749 = vmatprep.mubr.bf16.mxu0 0
        %1750 = vmatmul.mubr.bf16.gmra.mrb[0].mxu0 %v1502
        %v1751 = vpop.f32.mrb[0].mxu0
        %v1752 = vadd.f32 %v1540, %v1751
        %v1753 = vpop.f32.mrb[0].mxu0
        %v1754 = vadd.f32 %v1544, %v1753
        %v1755 = vpop.f32.mrb[0].mxu0
        %v1756 = vpop.f32.mrb[0].mxu0
        %1757 = vdwg.mxu0
        %1758 = vmatprep.subr.bf16.mxu0 %v1656
        %1759 = vmatpush1.bf16.msra.mxu0 %v1655
        %1760 = vmatprep.subr.bf16.mxu0 %v1660
        %1761 = vmatpush1.bf16.msra.mxu0 %v1659
        %1762 = vmatprep.subr.bf16.mxu0 %v1664
        %1763 = vmatpush1.bf16.msra.mxu0 %v1663
        %1764 = vmatprep.subr.bf16.mxu0 %v1668
        %1765 = vmatpush1.bf16.msra.mxu0 %v1667
        %1766 = vmatprep.subr.bf16.mxu0 %v1672
        %1767 = vmatpush1.bf16.msra.mxu0 %v1671
        %1768 = vmatprep.subr.bf16.mxu0 %v1676
        %1769 = vmatpush1.bf16.msra.mxu0 %v1675
        %1770 = vmatprep.subr.bf16.mxu0 %v1680
        %1771 = vmatpush1.bf16.msra.mxu0 %v1679
        %1772 = vmatprep.subr.bf16.mxu0 %v1684
        %1773 = vmatpush1.bf16.msra.mxu0 %v1683
        %1774 = vmatprep.subr.bf16.mxu0 0
        %1775 = vmatpush1.bf16.msra.mxu0 0
        %1776 = vmatprep.subr.bf16.mxu0 0
        %1777 = vmatpush1.bf16.msra.mxu0 0
        %1778 = vmatprep.subr.bf16.mxu0 0
        %1779 = vmatpush1.bf16.msra.mxu0 0
        %1780 = vmatprep.subr.bf16.mxu0 0
        %1781 = vmatpush1.bf16.msra.mxu0 0
        %1782 = vmatprep.subr.bf16.mxu0 0
        %1783 = vmatpush1.bf16.msra.mxu0 0
        %1784 = vmatprep.subr.bf16.mxu0 0
        %1785 = vmatpush1.bf16.msra.mxu0 0
        %1786 = vmatprep.subr.bf16.mxu0 0
        %1787 = vmatpush1.bf16.msra.mxu0 0
        %1788 = vmatprep.subr.bf16.mxu0 0
        %1789 = vmatpush1.bf16.msra.mxu0 0
        %1790 = vmatprep.mubr.bf16.mxu0 0
        %1791 = vmatmul.mubr.bf16.gmra.mrb[0].mxu0 %v1502
        %v1792 = vpop.f32.mrb[0].mxu0
        %v1793 = vadd.f32 %v1548, %v1792
        %v1794 = vpop.f32.mrb[0].mxu0
        %v1795 = vadd.f32 %v1552, %v1794
        %v1796 = vpop.f32.mrb[0].mxu0
        %v1797 = vpop.f32.mrb[0].mxu0
        %1798 = vdwg.mxu0
        %1799 = vst [vmem:[%s518] sm:$0xff] %v1752
        %1800 = vst [vmem:[%s518 + $0x8] sm:$0xff] %v1754
        %1801 = vst [vmem:[%s518 + $0x10] sm:$0xff] %v1793
        %1802 = vst [vmem:[%s518 + $0x18] sm:$0xff] %v1795
        %s1803 = sand.u32 %s285, 1
        %s1804 = scalar_lea.sflag [#allocation5], %s1803
        %s1805 = sand.u32 %s285, 1
        %s1806 = smul.addr %s1805, 32
        %s1807 = scalar_lea.vmem [#allocation14], %s1806
        // Predicated region
        $region89: #{tpu_custom_call.1} parent=59 // pred_check
          %p1808 = pneg %p295
        $region90: #{tpu_custom_call.1} parent=59 // pred_check_branch
          %1810 = sbr.rel (%p1808) target = $region92
        $region91: #{tpu_custom_call.1} parent=59 // pred_region
          %s1811 = smul.u32 4, %s38
          %s1813 = ssub.s32 512, 512
          %1814 = vsyncadd %s1804, %s1813
          %s1815 = smul.addr %s37, 8
          %s1816 = sadd.s32 %s1811, %s1815
          %s1817 = smul.addr %s1816, 128
          %s1818 = scalar_lea.hbm %s10, %s1817
          %s1820 = sshll.u32 %s1807, 4
          %s1821 = int_to_ptr.vmem [resolvable:$true] %s1820
          %1823 = dma.vmem_to_hbm [thread:$0]  %s1821, 512, %s1818, %s1804
        $region92: #{tpu_custom_call.1} parent=59 // pred_fallthru
          _
        // Predicated region
        $region93: #{tpu_custom_call.1} parent=59 // pred_check
          %p1824 = pneg %p321
        $region94: #{tpu_custom_call.1} parent=59 // pred_check_branch
          %1826 = sbr.rel (%p1824) target = $region96
        $region95: #{tpu_custom_call.1} parent=59 // pred_region
          %s1828 = ssub.s32 256, 256
          %1829 = vsyncadd [#allocation16], %s1828
          %s1830 = smul.addr %s37, 2
          %s1831 = smul.addr %s1830, 128
          %s1832 = scalar_lea.hbm %s11, %s1831
          %s1834 = sshll.u32 [#allocation15], 4
          %s1835 = int_to_ptr.vmem [resolvable:$true] %s1834
          %1837 = dma.vmem_to_hbm [thread:$0]  %s1835, 256, %s1832, [#allocation16]
        $region96: #{tpu_custom_call.1} parent=59 // pred_fallthru
          _
        // Predicated region
        $region97: #{tpu_custom_call.1} parent=59 // pred_check
          %p1838 = pneg %p321
        $region98: #{tpu_custom_call.1} parent=59 // pred_check_branch
          %1840 = sbr.rel (%p1838) target = $region100
        $region99: #{tpu_custom_call.1} parent=59 // pred_region
          %1841 = dma.done [#allocation16], 256
        $region100: #{tpu_custom_call.1} parent=59 // pred_fallthru
          _
      $region60: #{tpu_custom_call.1} parent=5 // pred_fallthru
        _
      %p1842 = scmp.le.s32.totalorder 2, %s28
      // Predicated region
      $region101: #{tpu_custom_call.1} parent=5 // pred_check
        %p1843 = pneg %p1842
      $region102: #{tpu_custom_call.1} parent=5 // pred_check_branch
        %1845 = sbr.rel (%p1843) target = $region104
      $region103: #{tpu_custom_call.1} parent=5 // pred_region
        %s1846 = ssub.s32 %s28, 2
        // Predicated region
        $region105: #{tpu_custom_call.1} parent=103 // pred_check
          %p1847 = pneg %p301
        $region106: #{tpu_custom_call.1} parent=103 // pred_check_branch
          %1849 = sbr.rel (%p1847) target = $region108
        $region107: #{tpu_custom_call.1} parent=103 // pred_region
          %s1850 = sand.u32 %s286, 1
          %s1851 = scalar_lea.sflag [#allocation5], %s1850
          %s1852 = sand.u32 %s286, 1
          %s1853 = smul.addr %s1852, 32
          %s1854 = scalar_lea.vmem [#allocation14], %s1853
          %1855 = dma.done %s1851, 512
        $region108: #{tpu_custom_call.1} parent=103 // pred_fallthru
          _
      $region104: #{tpu_custom_call.1} parent=5 // pred_fallthru
        _
    $region6: #{tpu_custom_call.1} parent=1 // loop_footer
      %s32 = sadd.s32 1, %s28
    $region7: #{tpu_custom_call.1} parent=1 // loop_footer_branch
      %27 = sbr.rel target = $region3
    $region8: #{tpu_custom_call.1} parent=1 // loop_exit
      _
    %1856 = vsyncpa [#allocation4], 1
    %s1857 = scalar_lea.sflag [#allocation4], 1
    %1858 = vsyncpa %s1857, 1
    %1859 = vsyncpa [#allocation7], 1
    %1860 = vsyncpa [#allocation10], 1
    %1861 = vsyncpa [#allocation13], 1
    %s1862 = scalar_lea.sflag [#allocation13], 1
    %1863 = vsyncpa %s1862, 1
    %1864 = vsyncpa [#allocation5], 1
    %s1865 = scalar_lea.sflag [#allocation5], 1
    %1866 = vsyncpa %s1865, 1
    %1867 = vsyncpa [#allocation16], 1

</llo_original>
